<compile_context>
chip_gen: v7x
topology: tpu7x:2x2x1
jax: 0.10.0
libtpu: 0.0.40
codegen_flags: <defaults>
</compile_context>

<pallas_src>
import functools

import jax
import jax.numpy as jnp
from jax import lax
from jax.experimental import pallas as pl
from jax.experimental.pallas import tpu as pltpu


# ----------------------------- Pallas kernel --------------------------------

def _vitdown_kernel(p00_ref, p01_ref, p10_ref, p11_ref, wf_ref, bf_ref,
                    out_ref, acc_ref):
    # pPQ_ref : (1, Ho+1, Wo+1, Cin)   parity-phase PQ of the padded input (compute dtype)
    # wf_ref  : (9, Cin, Cout_p)       fused per-tap weight  (conv3x3 @ conv1x1 * bn_scale)
    # bf_ref  : (1, Cout_p)  f32       fused bias            (conv bias through conv1x1 + bn)
    # out_ref : (1, Ho*Wo, Cout_p) f32
    # acc_ref : (Ho*Wo, Cout_p)    f32 VMEM scratch accumulator
    ho = p00_ref.shape[1] - 1
    wo = p00_ref.shape[2] - 1
    cin = p00_ref.shape[3]

    acc_ref[...] = jnp.zeros_like(acc_ref)

    # Load each phase once; all tap construction below is VMEM/vreg slicing only.
    phase = ((p00_ref[0], p01_ref[0]),
             (p10_ref[0], p11_ref[0]))            # each (Ho+1, Wo+1, Cin)

    # 3x3 stride-2 conv as 9 shifted matmuls accumulated in f32.
    # Tap (kh, kw) of output pixel (r, c) reads padded input (2r+kh, 2c+kw)
    #   = phase[kh%2][kw%2][r + kh//2, c + kw//2].
    for kh in range(3):
        for kw in range(3):
            dh, dw = kh // 2, kw // 2
            slab = phase[kh % 2][kw % 2][dh:dh + ho, dw:dw + wo, :]   # (Ho, Wo, Cin)
            a = slab.reshape(ho * wo, cin)                            # (M_img, Cin)
            w_tap = wf_ref[kh * 3 + kw]                               # (Cin, Cout_p)
            acc_ref[...] += jnp.dot(a, w_tap,
                                    preferred_element_type=jnp.float32)

    # fused bias + ReLU epilogue in f32, lane-dense (Cout_p % 128 == 0) store.
    z = acc_ref[...] + bf_ref[...]
    out_ref[0] = jnp.maximum(z, 0.0).astype(out_ref.dtype)


# ------------------------------ JAX wrapper ----------------------------------

def vitdown_forward(x_nchw, params, *, compute_dtype=jnp.bfloat16):
    """x_nchw: (N, Cin, H, W) float32. Returns (N, Cout, H//2, W//2) float32."""
    eps = 1e-5
    w_down = params["w_down"]          # (Cin, Cin, 3, 3)  PyTorch OIHW
    b_down = params["b_down"]          # (Cin,)
    w_pw = params["w_pw"]              # (Cout, Cin, 1, 1)
    gamma, beta = params["gamma"], params["beta"]
    r_mean, r_var = params["r_mean"], params["r_var"]

    N, Cin, H, W = x_nchw.shape
    Cout = w_pw.shape[0]
    Ho = (H + 2 - 3) // 2 + 1
    Wo = (W + 2 - 3) // 2 + 1
    Cout_p = ((Cout + 127) // 128) * 128           # lane-dense output width

    # ---- fold conv1x1 + eval-mode BN into the 3x3 conv (exact: no nonlinearity between) ----
    inv_std = 1.0 / jnp.sqrt(r_var + eps)
    scale = gamma * inv_std                                   # (Cout,)
    bn_bias = beta - r_mean * scale                           # (Cout,)
    w2s = (w_pw[:, :, 0, 0] * scale[:, None]).T               # (Cin, Cout)   ci,co
    w1t = jnp.transpose(w_down, (2, 3, 1, 0))                 # (3,3,Cin_in,Cin_out)
    wf = jnp.einsum("hwji,io->hwjo", w1t, w2s)                # (3,3,Cin,Cout)
    wf = wf.reshape(9, Cin, Cout)
    bf = b_down @ w2s + bn_bias                               # (Cout,)

    wf = jnp.pad(wf, ((0, 0), (0, 0), (0, Cout_p - Cout))).astype(compute_dtype)
    bf = jnp.pad(bf, (0, Cout_p - Cout)).reshape(1, Cout_p).astype(jnp.float32)

    # ---- parity-phase split of the padded input (~1x input bytes; no 9x im2col) ----
    x = jnp.transpose(x_nchw, (0, 2, 3, 1))                   # NHWC
    Hp, Wp = 2 * Ho + 2, 2 * Wo + 2                           # padded so phases are uniform
    xp = jnp.pad(x, ((0, 0), (1, Hp - H - 1), (1, Wp - W - 1), (0, 0)))
    phases = [xp[:, p::2, q::2, :].astype(compute_dtype)      # each (N, Ho+1, Wo+1, Cin)
              for p in (0, 1) for q in (0, 1)]

    phase_spec = pl.BlockSpec((1, Ho + 1, Wo + 1, Cin), lambda n: (n, 0, 0, 0))
    out_flat = pl.pallas_call(
        _vitdown_kernel,
        out_shape=jax.ShapeDtypeStruct((N, Ho * Wo, Cout_p), jnp.float32),
        grid_spec=pltpu.PrefetchScalarGridSpec(
            num_scalar_prefetch=0,
            grid=(N,),
            in_specs=[phase_spec, phase_spec, phase_spec, phase_spec,
                      pl.BlockSpec((9, Cin, Cout_p), lambda n: (0, 0, 0)),
                      pl.BlockSpec((1, Cout_p), lambda n: (0, 0))],
            out_specs=pl.BlockSpec((1, Ho * Wo, Cout_p), lambda n: (n, 0, 0)),
            scratch_shapes=[pltpu.VMEM((Ho * Wo, Cout_p), jnp.float32)],
        ),
        compiler_params=pltpu.CompilerParams(
            dimension_semantics=("parallel",),
            vmem_limit_bytes=48 * 1024 * 1024,
        ),
    )(*phases, wf, bf)

    out = out_flat[:, :, :Cout].reshape(N, Ho, Wo, Cout)
    return jnp.transpose(out, (0, 3, 1, 2))                   # back to NCHW


# -------------------------- reference (pure JAX) ------------------------------

def vitdown_reference(x, params):
    eps = 1e-5
    y = lax.conv_general_dilated(
        x, params["w_down"], window_strides=(2, 2),
        padding=((1, 1), (1, 1)),
        dimension_numbers=("NCHW", "OIHW", "NCHW"))
    y = y + params["b_down"][None, :, None, None]
    z = lax.conv_general_dilated(
        y, params["w_pw"], window_strides=(1, 1), padding=((0, 0), (0, 0)),
        dimension_numbers=("NCHW", "OIHW", "NCHW"))
    z = (z - params["r_mean"][None, :, None, None]) / jnp.sqrt(
        params["r_var"][None, :, None, None] + eps)
    z = z * params["gamma"][None, :, None, None] + params["beta"][None, :, None, None]
    return jnp.maximum(z, 0.0)


# --------------------------------- main ---------------------------------------

if __name__ == "__main__":
    key = jax.random.PRNGKey(0)
    k_x, k_w1, k_b1, k_w2, k_g, k_b, k_m, k_v = jax.random.split(key, 8)

    N, Cin, H, W = 2, 4, 16, 16
    Cout = 8

    x = jax.random.normal(k_x, (N, Cin, H, W), dtype=jnp.float32)

    params = {
        "w_down": 0.1 * jax.random.normal(k_w1, (Cin, Cin, 3, 3), jnp.float32),
        "b_down": 0.1 * jax.random.normal(k_b1, (Cin,), jnp.float32),
        "w_pw": 0.1 * jax.random.normal(k_w2, (Cout, Cin, 1, 1), jnp.float32),
        "gamma": 1.0 + 0.1 * jax.random.normal(k_g, (Cout,), jnp.float32),
        "beta": 0.1 * jax.random.normal(k_b, (Cout,), jnp.float32),
        "r_mean": 0.1 * jax.random.normal(k_m, (Cout,), jnp.float32),
        "r_var": 0.5 + jax.random.uniform(k_v, (Cout,), jnp.float32),
    }

    ref = jax.block_until_ready(vitdown_reference(x, params))

    # 1) exactness check of the kernel logic with f32 compute
    fwd_f32 = jax.jit(functools.partial(vitdown_forward, compute_dtype=jnp.float32))
    out_f32 = jax.block_until_ready(fwd_f32(x, params))
    assert out_f32.shape == (N, Cout, H // 2, W // 2), out_f32.shape
    assert jnp.allclose(out_f32, ref, rtol=1e-4, atol=1e-4), float(
        jnp.max(jnp.abs(out_f32 - ref)))

    # 2) default fast path: bf16 matmul inputs (f32 accumulation) -> looser tolerance
    fwd_bf16 = jax.jit(functools.partial(vitdown_forward, compute_dtype=jnp.bfloat16))
    out_bf16 = jax.block_until_ready(fwd_bf16(x, params))
    assert out_bf16.shape == (N, Cout, H // 2, W // 2), out_bf16.shape
    assert jnp.allclose(out_bf16, ref, rtol=2e-2, atol=2e-2), float(
        jnp.max(jnp.abs(out_bf16 - ref)))

    print("KERNEL_OK")
</pallas_src>

<mosaic_0001>
module attributes {stable_mosaic.version = 11 : i64} {
  func.func @_vitdown_kernel(%arg0: i32, %arg1: memref<1x9x9x4xf32, #tpu.memory_space<vmem>>, %arg2: memref<1x9x9x4xf32, #tpu.memory_space<vmem>>, %arg3: memref<1x9x9x4xf32, #tpu.memory_space<vmem>>, %arg4: memref<1x9x9x4xf32, #tpu.memory_space<vmem>>, %arg5: memref<9x4x128xf32, #tpu.memory_space<vmem>>, %arg6: memref<1x128xf32, #tpu.memory_space<vmem>>, %arg7: memref<1x64x128xf32, #tpu.memory_space<vmem>>, %arg8: memref<64x128xf32, #tpu.memory_space<vmem>>) attributes {dimension_semantics = [#tpu.dimension_semantics<parallel>], iteration_bounds = array<i64: 2>, scalar_prefetch = 0 : i64, scratch_operands = 1 : i64, tpu.core_type = #tpu.core_type<tc>, window_params = [{transform_indices = @transform_0, window_bounds = array<i64: 1, 9, 9, 4>}, {transform_indices = @transform_1, window_bounds = array<i64: 1, 9, 9, 4>}, {transform_indices = @transform_2, window_bounds = array<i64: 1, 9, 9, 4>}, {transform_indices = @transform_3, window_bounds = array<i64: 1, 9, 9, 4>}, {pipeline_mode = #tpu.pipeline_mode<synchronous>, transform_indices = @transform_4, window_bounds = array<i64: 9, 4, 128>}, {pipeline_mode = #tpu.pipeline_mode<synchronous>, transform_indices = @transform_5, window_bounds = array<i64: 1, 128>}, {transform_indices = @transform_6, window_bounds = array<i64: 1, 64, 128>}]} {
    %cst = arith.constant 0.000000e+00 : f32
    %0 = vector.broadcast %cst : f32 to vector<64x128xf32>
    %c0 = arith.constant 0 : index
    %c0_0 = arith.constant 0 : index
    %1 = vector.load %arg8[%c0, %c0_0] : memref<64x128xf32, #tpu.memory_space<vmem>>, vector<64x128xf32>
    tpu.vector_store %arg8[%c0, %c0_0], %0 {strides = array<i32>} : memref<64x128xf32, #tpu.memory_space<vmem>>, vector<64x128xf32>,
    %c0_1 = arith.constant 0 : index
    %c0_2 = arith.constant 0 : index
    %c0_3 = arith.constant 0 : index
    %c0_4 = arith.constant 0 : index
    %2 = vector.load %arg1[%c0_1, %c0_2, %c0_3, %c0_4] : memref<1x9x9x4xf32, #tpu.memory_space<vmem>>, vector<1x9x9x4xf32>
    %3 = vector.shape_cast %2 : vector<1x9x9x4xf32> to vector<9x9x4xf32>
    %c0_5 = arith.constant 0 : index
    %c0_6 = arith.constant 0 : index
    %c0_7 = arith.constant 0 : index
    %c0_8 = arith.constant 0 : index
    %4 = vector.load %arg2[%c0_5, %c0_6, %c0_7, %c0_8] : memref<1x9x9x4xf32, #tpu.memory_space<vmem>>, vector<1x9x9x4xf32>
    %5 = vector.shape_cast %4 : vector<1x9x9x4xf32> to vector<9x9x4xf32>
    %c0_9 = arith.constant 0 : index
    %c0_10 = arith.constant 0 : index
    %c0_11 = arith.constant 0 : index
    %c0_12 = arith.constant 0 : index
    %6 = vector.load %arg3[%c0_9, %c0_10, %c0_11, %c0_12] : memref<1x9x9x4xf32, #tpu.memory_space<vmem>>, vector<1x9x9x4xf32>
    %7 = vector.shape_cast %6 : vector<1x9x9x4xf32> to vector<9x9x4xf32>
    %c0_13 = arith.constant 0 : index
    %c0_14 = arith.constant 0 : index
    %c0_15 = arith.constant 0 : index
    %c0_16 = arith.constant 0 : index
    %8 = vector.load %arg4[%c0_13, %c0_14, %c0_15, %c0_16] : memref<1x9x9x4xf32, #tpu.memory_space<vmem>>, vector<1x9x9x4xf32>
    %9 = vector.shape_cast %8 : vector<1x9x9x4xf32> to vector<9x9x4xf32>
    %10 = vector.extract_strided_slice %3 {offsets = [0, 0, 0], sizes = [8, 8, 4], strides = [1, 1, 1]} : vector<9x9x4xf32> to vector<8x8x4xf32>
    %11 = vector.shape_cast %10 : vector<8x8x4xf32> to vector<64x4xf32>
    %c0_17 = arith.constant 0 : index
    %c0_18 = arith.constant 0 : index
    %c0_19 = arith.constant 0 : index
    %12 = vector.load %arg5[%c0_17, %c0_18, %c0_19] : memref<9x4x128xf32, #tpu.memory_space<vmem>>, vector<1x4x128xf32>
    %13 = vector.shape_cast %12 : vector<1x4x128xf32> to vector<4x128xf32>
    %c0_20 = arith.constant 0 : index
    %c0_21 = arith.constant 0 : index
    %14 = vector.load %arg8[%c0_20, %c0_21] : memref<64x128xf32, #tpu.memory_space<vmem>>, vector<64x128xf32>
    %cst_22 = arith.constant dense<0.000000e+00> : vector<64x128xf32>
    %15 = tpu.matmul %11, %13, %cst_22 {dimension_numbers = #tpu.dot_dimension_numbers<[1], [0], [0], [1], [0, 0, 1, 1], [], []>} : vector<64x4xf32>, vector<4x128xf32>, vector<64x128xf32> -> vector<64x128xf32>
    %16 = arith.addf %14, %15 : vector<64x128xf32>
    %c0_23 = arith.constant 0 : index
    %c0_24 = arith.constant 0 : index
    %17 = vector.load %arg8[%c0_23, %c0_24] : memref<64x128xf32, #tpu.memory_space<vmem>>, vector<64x128xf32>
    tpu.vector_store %arg8[%c0_23, %c0_24], %16 {strides = array<i32>} : memref<64x128xf32, #tpu.memory_space<vmem>>, vector<64x128xf32>,
    %18 = vector.extract_strided_slice %5 {offsets = [0, 0, 0], sizes = [8, 8, 4], strides = [1, 1, 1]} : vector<9x9x4xf32> to vector<8x8x4xf32>
    %19 = vector.shape_cast %18 : vector<8x8x4xf32> to vector<64x4xf32>
    %c1 = arith.constant 1 : index
    %c0_25 = arith.constant 0 : index
    %c0_26 = arith.constant 0 : index
    %20 = vector.load %arg5[%c1, %c0_25, %c0_26] : memref<9x4x128xf32, #tpu.memory_space<vmem>>, vector<1x4x128xf32>
    %21 = vector.shape_cast %20 : vector<1x4x128xf32> to vector<4x128xf32>
    %c0_27 = arith.constant 0 : index
    %c0_28 = arith.constant 0 : index
    %22 = vector.load %arg8[%c0_27, %c0_28] : memref<64x128xf32, #tpu.memory_space<vmem>>, vector<64x128xf32>
    %cst_29 = arith.constant dense<0.000000e+00> : vector<64x128xf32>
    %23 = tpu.matmul %19, %21, %cst_29 {dimension_numbers = #tpu.dot_dimension_numbers<[1], [0], [0], [1], [0, 0, 1, 1], [], []>} : vector<64x4xf32>, vector<4x128xf32>, vector<64x128xf32> -> vector<64x128xf32>
    %24 = arith.addf %22, %23 : vector<64x128xf32>
    %c0_30 = arith.constant 0 : index
    %c0_31 = arith.constant 0 : index
    %25 = vector.load %arg8[%c0_30, %c0_31] : memref<64x128xf32, #tpu.memory_space<vmem>>, vector<64x128xf32>
    tpu.vector_store %arg8[%c0_30, %c0_31], %24 {strides = array<i32>} : memref<64x128xf32, #tpu.memory_space<vmem>>, vector<64x128xf32>,
    %26 = vector.extract_strided_slice %3 {offsets = [0, 1, 0], sizes = [8, 8, 4], strides = [1, 1, 1]} : vector<9x9x4xf32> to vector<8x8x4xf32>
    %27 = vector.shape_cast %26 : vector<8x8x4xf32> to vector<64x4xf32>
    %c2 = arith.constant 2 : index
    %c0_32 = arith.constant 0 : index
    %c0_33 = arith.constant 0 : index
    %28 = vector.load %arg5[%c2, %c0_32, %c0_33] : memref<9x4x128xf32, #tpu.memory_space<vmem>>, vector<1x4x128xf32>
    %29 = vector.shape_cast %28 : vector<1x4x128xf32> to vector<4x128xf32>
    %c0_34 = arith.constant 0 : index
    %c0_35 = arith.constant 0 : index
    %30 = vector.load %arg8[%c0_34, %c0_35] : memref<64x128xf32, #tpu.memory_space<vmem>>, vector<64x128xf32>
    %cst_36 = arith.constant dense<0.000000e+00> : vector<64x128xf32>
    %31 = tpu.matmul %27, %29, %cst_36 {dimension_numbers = #tpu.dot_dimension_numbers<[1], [0], [0], [1], [0, 0, 1, 1], [], []>} : vector<64x4xf32>, vector<4x128xf32>, vector<64x128xf32> -> vector<64x128xf32>
    %32 = arith.addf %30, %31 : vector<64x128xf32>
    %c0_37 = arith.constant 0 : index
    %c0_38 = arith.constant 0 : index
    %33 = vector.load %arg8[%c0_37, %c0_38] : memref<64x128xf32, #tpu.memory_space<vmem>>, vector<64x128xf32>
    tpu.vector_store %arg8[%c0_37, %c0_38], %32 {strides = array<i32>} : memref<64x128xf32, #tpu.memory_space<vmem>>, vector<64x128xf32>,
    %34 = vector.extract_strided_slice %7 {offsets = [0, 0, 0], sizes = [8, 8, 4], strides = [1, 1, 1]} : vector<9x9x4xf32> to vector<8x8x4xf32>
    %35 = vector.shape_cast %34 : vector<8x8x4xf32> to vector<64x4xf32>
    %c3 = arith.constant 3 : index
    %c0_39 = arith.constant 0 : index
    %c0_40 = arith.constant 0 : index
    %36 = vector.load %arg5[%c3, %c0_39, %c0_40] : memref<9x4x128xf32, #tpu.memory_space<vmem>>, vector<1x4x128xf32>
    %37 = vector.shape_cast %36 : vector<1x4x128xf32> to vector<4x128xf32>
    %c0_41 = arith.constant 0 : index
    %c0_42 = arith.constant 0 : index
    %38 = vector.load %arg8[%c0_41, %c0_42] : memref<64x128xf32, #tpu.memory_space<vmem>>, vector<64x128xf32>
    %cst_43 = arith.constant dense<0.000000e+00> : vector<64x128xf32>
    %39 = tpu.matmul %35, %37, %cst_43 {dimension_numbers = #tpu.dot_dimension_numbers<[1], [0], [0], [1], [0, 0, 1, 1], [], []>} : vector<64x4xf32>, vector<4x128xf32>, vector<64x128xf32> -> vector<64x128xf32>
    %40 = arith.addf %38, %39 : vector<64x128xf32>
    %c0_44 = arith.constant 0 : index
    %c0_45 = arith.constant 0 : index
    %41 = vector.load %arg8[%c0_44, %c0_45] : memref<64x128xf32, #tpu.memory_space<vmem>>, vector<64x128xf32>
    tpu.vector_store %arg8[%c0_44, %c0_45], %40 {strides = array<i32>} : memref<64x128xf32, #tpu.memory_space<vmem>>, vector<64x128xf32>,
    %42 = vector.extract_strided_slice %9 {offsets = [0, 0, 0], sizes = [8, 8, 4], strides = [1, 1, 1]} : vector<9x9x4xf32> to vector<8x8x4xf32>
    %43 = vector.shape_cast %42 : vector<8x8x4xf32> to vector<64x4xf32>
    %c4 = arith.constant 4 : index
    %c0_46 = arith.constant 0 : index
    %c0_47 = arith.constant 0 : index
    %44 = vector.load %arg5[%c4, %c0_46, %c0_47] : memref<9x4x128xf32, #tpu.memory_space<vmem>>, vector<1x4x128xf32>
    %45 = vector.shape_cast %44 : vector<1x4x128xf32> to vector<4x128xf32>
    %c0_48 = arith.constant 0 : index
    %c0_49 = arith.constant 0 : index
    %46 = vector.load %arg8[%c0_48, %c0_49] : memref<64x128xf32, #tpu.memory_space<vmem>>, vector<64x128xf32>
    %cst_50 = arith.constant dense<0.000000e+00> : vector<64x128xf32>
    %47 = tpu.matmul %43, %45, %cst_50 {dimension_numbers = #tpu.dot_dimension_numbers<[1], [0], [0], [1], [0, 0, 1, 1], [], []>} : vector<64x4xf32>, vector<4x128xf32>, vector<64x128xf32> -> vector<64x128xf32>
    %48 = arith.addf %46, %47 : vector<64x128xf32>
    %c0_51 = arith.constant 0 : index
    %c0_52 = arith.constant 0 : index
    %49 = vector.load %arg8[%c0_51, %c0_52] : memref<64x128xf32, #tpu.memory_space<vmem>>, vector<64x128xf32>
    tpu.vector_store %arg8[%c0_51, %c0_52], %48 {strides = array<i32>} : memref<64x128xf32, #tpu.memory_space<vmem>>, vector<64x128xf32>,
    %50 = vector.extract_strided_slice %7 {offsets = [0, 1, 0], sizes = [8, 8, 4], strides = [1, 1, 1]} : vector<9x9x4xf32> to vector<8x8x4xf32>
    %51 = vector.shape_cast %50 : vector<8x8x4xf32> to vector<64x4xf32>
    %c5 = arith.constant 5 : index
    %c0_53 = arith.constant 0 : index
    %c0_54 = arith.constant 0 : index
    %52 = vector.load %arg5[%c5, %c0_53, %c0_54] : memref<9x4x128xf32, #tpu.memory_space<vmem>>, vector<1x4x128xf32>
    %53 = vector.shape_cast %52 : vector<1x4x128xf32> to vector<4x128xf32>
    %c0_55 = arith.constant 0 : index
    %c0_56 = arith.constant 0 : index
    %54 = vector.load %arg8[%c0_55, %c0_56] : memref<64x128xf32, #tpu.memory_space<vmem>>, vector<64x128xf32>
    %cst_57 = arith.constant dense<0.000000e+00> : vector<64x128xf32>
    %55 = tpu.matmul %51, %53, %cst_57 {dimension_numbers = #tpu.dot_dimension_numbers<[1], [0], [0], [1], [0, 0, 1, 1], [], []>} : vector<64x4xf32>, vector<4x128xf32>, vector<64x128xf32> -> vector<64x128xf32>
    %56 = arith.addf %54, %55 : vector<64x128xf32>
    %c0_58 = arith.constant 0 : index
    %c0_59 = arith.constant 0 : index
    %57 = vector.load %arg8[%c0_58, %c0_59] : memref<64x128xf32, #tpu.memory_space<vmem>>, vector<64x128xf32>
    tpu.vector_store %arg8[%c0_58, %c0_59], %56 {strides = array<i32>} : memref<64x128xf32, #tpu.memory_space<vmem>>, vector<64x128xf32>,
    %58 = vector.extract_strided_slice %3 {offsets = [1, 0, 0], sizes = [8, 8, 4], strides = [1, 1, 1]} : vector<9x9x4xf32> to vector<8x8x4xf32>
    %59 = vector.shape_cast %58 : vector<8x8x4xf32> to vector<64x4xf32>
    %c6 = arith.constant 6 : index
    %c0_60 = arith.constant 0 : index
    %c0_61 = arith.constant 0 : index
    %60 = vector.load %arg5[%c6, %c0_60, %c0_61] : memref<9x4x128xf32, #tpu.memory_space<vmem>>, vector<1x4x128xf32>
    %61 = vector.shape_cast %60 : vector<1x4x128xf32> to vector<4x128xf32>
    %c0_62 = arith.constant 0 : index
    %c0_63 = arith.constant 0 : index
    %62 = vector.load %arg8[%c0_62, %c0_63] : memref<64x128xf32, #tpu.memory_space<vmem>>, vector<64x128xf32>
    %cst_64 = arith.constant dense<0.000000e+00> : vector<64x128xf32>
    %63 = tpu.matmul %59, %61, %cst_64 {dimension_numbers = #tpu.dot_dimension_numbers<[1], [0], [0], [1], [0, 0, 1, 1], [], []>} : vector<64x4xf32>, vector<4x128xf32>, vector<64x128xf32> -> vector<64x128xf32>
    %64 = arith.addf %62, %63 : vector<64x128xf32>
    %c0_65 = arith.constant 0 : index
    %c0_66 = arith.constant 0 : index
    %65 = vector.load %arg8[%c0_65, %c0_66] : memref<64x128xf32, #tpu.memory_space<vmem>>, vector<64x128xf32>
    tpu.vector_store %arg8[%c0_65, %c0_66], %64 {strides = array<i32>} : memref<64x128xf32, #tpu.memory_space<vmem>>, vector<64x128xf32>,
    %66 = vector.extract_strided_slice %5 {offsets = [1, 0, 0], sizes = [8, 8, 4], strides = [1, 1, 1]} : vector<9x9x4xf32> to vector<8x8x4xf32>
    %67 = vector.shape_cast %66 : vector<8x8x4xf32> to vector<64x4xf32>
    %c7 = arith.constant 7 : index
    %c0_67 = arith.constant 0 : index
    %c0_68 = arith.constant 0 : index
    %68 = vector.load %arg5[%c7, %c0_67, %c0_68] : memref<9x4x128xf32, #tpu.memory_space<vmem>>, vector<1x4x128xf32>
    %69 = vector.shape_cast %68 : vector<1x4x128xf32> to vector<4x128xf32>
    %c0_69 = arith.constant 0 : index
    %c0_70 = arith.constant 0 : index
    %70 = vector.load %arg8[%c0_69, %c0_70] : memref<64x128xf32, #tpu.memory_space<vmem>>, vector<64x128xf32>
    %cst_71 = arith.constant dense<0.000000e+00> : vector<64x128xf32>
    %71 = tpu.matmul %67, %69, %cst_71 {dimension_numbers = #tpu.dot_dimension_numbers<[1], [0], [0], [1], [0, 0, 1, 1], [], []>} : vector<64x4xf32>, vector<4x128xf32>, vector<64x128xf32> -> vector<64x128xf32>
    %72 = arith.addf %70, %71 : vector<64x128xf32>
    %c0_72 = arith.constant 0 : index
    %c0_73 = arith.constant 0 : index
    %73 = vector.load %arg8[%c0_72, %c0_73] : memref<64x128xf32, #tpu.memory_space<vmem>>, vector<64x128xf32>
    tpu.vector_store %arg8[%c0_72, %c0_73], %72 {strides = array<i32>} : memref<64x128xf32, #tpu.memory_space<vmem>>, vector<64x128xf32>,
    %74 = vector.extract_strided_slice %3 {offsets = [1, 1, 0], sizes = [8, 8, 4], strides = [1, 1, 1]} : vector<9x9x4xf32> to vector<8x8x4xf32>
    %75 = vector.shape_cast %74 : vector<8x8x4xf32> to vector<64x4xf32>
    %c8 = arith.constant 8 : index
    %c0_74 = arith.constant 0 : index
    %c0_75 = arith.constant 0 : index
    %76 = vector.load %arg5[%c8, %c0_74, %c0_75] : memref<9x4x128xf32, #tpu.memory_space<vmem>>, vector<1x4x128xf32>
    %77 = vector.shape_cast %76 : vector<1x4x128xf32> to vector<4x128xf32>
    %c0_76 = arith.constant 0 : index
    %c0_77 = arith.constant 0 : index
    %78 = vector.load %arg8[%c0_76, %c0_77] : memref<64x128xf32, #tpu.memory_space<vmem>>, vector<64x128xf32>
    %cst_78 = arith.constant dense<0.000000e+00> : vector<64x128xf32>
    %79 = tpu.matmul %75, %77, %cst_78 {dimension_numbers = #tpu.dot_dimension_numbers<[1], [0], [0], [1], [0, 0, 1, 1], [], []>} : vector<64x4xf32>, vector<4x128xf32>, vector<64x128xf32> -> vector<64x128xf32>
    %80 = arith.addf %78, %79 : vector<64x128xf32>
    %c0_79 = arith.constant 0 : index
    %c0_80 = arith.constant 0 : index
    %81 = vector.load %arg8[%c0_79, %c0_80] : memref<64x128xf32, #tpu.memory_space<vmem>>, vector<64x128xf32>
    tpu.vector_store %arg8[%c0_79, %c0_80], %80 {strides = array<i32>} : memref<64x128xf32, #tpu.memory_space<vmem>>, vector<64x128xf32>,
    %c0_81 = arith.constant 0 : index
    %c0_82 = arith.constant 0 : index
    %82 = vector.load %arg8[%c0_81, %c0_82] : memref<64x128xf32, #tpu.memory_space<vmem>>, vector<64x128xf32>
    %c0_83 = arith.constant 0 : index
    %c0_84 = arith.constant 0 : index
    %83 = vector.load %arg6[%c0_83, %c0_84] : memref<1x128xf32, #tpu.memory_space<vmem>>, vector<1x128xf32>
    %84 = vector.broadcast %83 : vector<1x128xf32> to vector<64x128xf32>
    %85 = arith.addf %82, %84 : vector<64x128xf32>
    %cst_85 = arith.constant 0.000000e+00 : f32
    %86 = vector.broadcast %cst_85 : f32 to vector<64x128xf32>
    %87 = arith.maximumf %85, %86 : vector<64x128xf32>
    %c0_86 = arith.constant 0 : index
    %c0_87 = arith.constant 0 : index
    %c0_88 = arith.constant 0 : index
    %88 = vector.load %arg7[%c0_86, %c0_87, %c0_88] : memref<1x64x128xf32, #tpu.memory_space<vmem>>, vector<1x64x128xf32>
    %89 = vector.shape_cast %88 : vector<1x64x128xf32> to vector<64x128xf32>
    %90 = vector.shape_cast %87 : vector<64x128xf32> to vector<1x64x128xf32>
    tpu.vector_store %arg7[%c0_86, %c0_87, %c0_88], %90 {strides = array<i32>} : memref<1x64x128xf32, #tpu.memory_space<vmem>>, vector<1x64x128xf32>,
    return
  }
  func.func @transform_0(%arg0: i32) -> (i32, i32, i32, i32) {
    %c0_i32 = arith.constant 0 : i32
    %c0_i32_0 = arith.constant 0 : i32
    %c0_i32_1 = arith.constant 0 : i32
    %c0_i32_2 = arith.constant 0 : i32
    return %arg0, %c0_i32, %c0_i32_0, %c0_i32_1 : i32, i32, i32, i32
  }
  func.func @transform_1(%arg0: i32) -> (i32, i32, i32, i32) {
    %c0_i32 = arith.constant 0 : i32
    %c0_i32_0 = arith.constant 0 : i32
    %c0_i32_1 = arith.constant 0 : i32
    %c0_i32_2 = arith.constant 0 : i32
    return %arg0, %c0_i32, %c0_i32_0, %c0_i32_1 : i32, i32, i32, i32
  }
  func.func @transform_2(%arg0: i32) -> (i32, i32, i32, i32) {
    %c0_i32 = arith.constant 0 : i32
    %c0_i32_0 = arith.constant 0 : i32
    %c0_i32_1 = arith.constant 0 : i32
    %c0_i32_2 = arith.constant 0 : i32
    return %arg0, %c0_i32, %c0_i32_0, %c0_i32_1 : i32, i32, i32, i32
  }
  func.func @transform_3(%arg0: i32) -> (i32, i32, i32, i32) {
    %c0_i32 = arith.constant 0 : i32
    %c0_i32_0 = arith.constant 0 : i32
    %c0_i32_1 = arith.constant 0 : i32
    %c0_i32_2 = arith.constant 0 : i32
    return %arg0, %c0_i32, %c0_i32_0, %c0_i32_1 : i32, i32, i32, i32
  }
  func.func @transform_4(%arg0: i32) -> (i32, i32, i32) {
    %c0_i32 = arith.constant 0 : i32
    %c0_i32_0 = arith.constant 0 : i32
    %c0_i32_1 = arith.constant 0 : i32
    %c0_i32_2 = arith.constant 0 : i32
    return %c0_i32, %c0_i32_0, %c0_i32_1 : i32, i32, i32
  }
  func.func @transform_5(%arg0: i32) -> (i32, i32) {
    %c0_i32 = arith.constant 0 : i32
    %c0_i32_0 = arith.constant 0 : i32
    %c0_i32_1 = arith.constant 0 : i32
    return %c0_i32, %c0_i32_0 : i32, i32
  }
  func.func @transform_6(%arg0: i32) -> (i32, i32, i32) {
    %c0_i32 = arith.constant 0 : i32
    %c0_i32_0 = arith.constant 0 : i32
    %c0_i32_1 = arith.constant 0 : i32
    return %arg0, %c0_i32, %c0_i32_0 : i32, i32, i32
  }
}

</mosaic_0001>

<llo_original>
// kernel: vitdown_forward.1
$region0: #{vitdown_forward.1}
  #allocation0 [shape = 'u32[]', space=smem, size = 0x4, offset = 0x4, fixed_abs, tag = 'smem constant byte address 0x4 - core index']
  #allocation1 [shape = 'u32[144,128]{1,0:T(1,128)}', space=vmem, size = 0x12000, scoped, tag = 'internal scratch']
  #allocation2 [shape = 'f32[64,128]{1,0:T(8,128)}', space=vmem, size = 0x8000, scoped, tag = 'scratch operand']
  %s0 = inlined_call_operand.vmem [shape: f32[2,9,9,4], index: 0, kind: input, shape index: {}]
  %s1 = inlined_call_operand.vmem [shape: f32[2,9,9,4], index: 1, kind: input, shape index: {}]
  %s2 = inlined_call_operand.vmem [shape: f32[2,9,9,4], index: 2, kind: input, shape index: {}]
  %s3 = inlined_call_operand.vmem [shape: f32[2,9,9,4], index: 3, kind: input, shape index: {}]
  %s4 = inlined_call_operand.vmem [shape: f32[9,4,128], index: 4, kind: input, shape index: {}]
  %s5 = inlined_call_operand.vmem [shape: f32[1,128], index: 5, kind: input, shape index: {}]
  %s6 = inlined_call_operand.vmem [shape: f32[2,64,128], index: 6, kind: output, shape index: {}]
  %s7 = sld [smem:[#allocation0]]
  $region57: #{vitdown_forward.1} parent=0
    _
  %s9 = ssub.s32 1, %s7
  %s10 = scalar_select 0, %s9, %s7
  loop: start=0, step=1, limit=4
  $region2: #{vitdown_forward.1} parent=0 // loop_pre_header
    _
  $region3: #{vitdown_forward.1} parent=0 // loop_header
    %s12 = sphi 0, %s16
    %p13 = scmp.ge.s32.totalorder %s12, 4
    %s22 = sphi 0, %s24
    %s25 = sphi 0, %s22
    %s26 = sphi 0, %s25
    %s42 = sphi 0, %s26
    %s48 = sphi 0, %s50
    %s51 = sphi 0, %s48
    %s52 = sphi 0, %s51
    %s68 = sphi 0, %s52
    %s74 = sphi 0, %s76
    %s77 = sphi 0, %s74
    %s78 = sphi 0, %s77
    %s94 = sphi 0, %s78
    %s100 = sphi 0, %s102
    %s103 = sphi 0, %s100
    %s104 = sphi 0, %s103
    %s120 = sphi 0, %s104
    %s124 = sphi 0, %s124
    %s126 = sphi 0, %s124
    %s127 = sphi 0, %s126
    %s141 = sphi 0, %s127
    %s145 = sphi 0, %s145
    %s147 = sphi 0, %s145
    %s148 = sphi 0, %s147
    %s162 = sphi 0, %s148
    %s168 = sphi 0, %s170
    %s171 = sphi 0, %s168
    %s172 = sphi 0, %s171
    %s188 = sphi 0, %s172
  $region4: #{vitdown_forward.1} parent=0 // loop_header_branch
    %15 = sbr.rel (%p13) target = $region8
  $region5: #{vitdown_forward.1} parent=0 // loop_body
    %s17 = ssub.s32 %s12, 1
    %s18 = ssub.s32 %s12, 2
    %s19 = sadd.s32 %s12, 1
    %s20 = ssub.s32 %s12, %s19
    %p21 = scmp.eq.s32.totalorder %s20, 0
    %s23 = sadd.s32 %s22, 1
    %s24 = scalar_select %p21, %s22, %s23
    %p27 = pneg %p21
    %p28 = scmp.eq.s32.totalorder %s12, 1
    %p29 = por %p27, %p28
    %p30 = scmp.ne.s32.totalorder %s22, %s25
    %p31 = scmp.eq.s32.totalorder %s12, 0
    %p32 = por %p30, %p31
    %p33 = scmp.ne.s32.totalorder %s22, %s25
    %p34 = scmp.eq.s32.totalorder %s17, 1
    %p35 = por %p33, %p34
    %p36 = scmp.ne.s32.totalorder %s25, %s26
    %p37 = scmp.eq.s32.totalorder %s17, 0
    %p38 = por %p36, %p37
    %p39 = scmp.ne.s32.totalorder %s25, %s26
    %p40 = scmp.eq.s32.totalorder %s18, 1
    %p41 = por %p39, %p40
    %p43 = scmp.ne.s32.totalorder %s26, %s42
    %p44 = scmp.eq.s32.totalorder %s18, 0
    %p45 = por %p43, %p44
    %s46 = ssub.s32 %s12, %s19
    %p47 = scmp.eq.s32.totalorder %s46, 0
    %s49 = sadd.s32 %s48, 1
    %s50 = scalar_select %p47, %s48, %s49
    %p53 = pneg %p47
    %p54 = scmp.eq.s32.totalorder %s12, 1
    %p55 = por %p53, %p54
    %p56 = scmp.ne.s32.totalorder %s48, %s51
    %p57 = scmp.eq.s32.totalorder %s12, 0
    %p58 = por %p56, %p57
    %p59 = scmp.ne.s32.totalorder %s48, %s51
    %p60 = scmp.eq.s32.totalorder %s17, 1
    %p61 = por %p59, %p60
    %p62 = scmp.ne.s32.totalorder %s51, %s52
    %p63 = scmp.eq.s32.totalorder %s17, 0
    %p64 = por %p62, %p63
    %p65 = scmp.ne.s32.totalorder %s51, %s52
    %p66 = scmp.eq.s32.totalorder %s18, 1
    %p67 = por %p65, %p66
    %p69 = scmp.ne.s32.totalorder %s52, %s68
    %p70 = scmp.eq.s32.totalorder %s18, 0
    %p71 = por %p69, %p70
    %s72 = ssub.s32 %s12, %s19
    %p73 = scmp.eq.s32.totalorder %s72, 0
    %s75 = sadd.s32 %s74, 1
    %s76 = scalar_select %p73, %s74, %s75
    %p79 = pneg %p73
    %p80 = scmp.eq.s32.totalorder %s12, 1
    %p81 = por %p79, %p80
    %p82 = scmp.ne.s32.totalorder %s74, %s77
    %p83 = scmp.eq.s32.totalorder %s12, 0
    %p84 = por %p82, %p83
    %p85 = scmp.ne.s32.totalorder %s74, %s77
    %p86 = scmp.eq.s32.totalorder %s17, 1
    %p87 = por %p85, %p86
    %p88 = scmp.ne.s32.totalorder %s77, %s78
    %p89 = scmp.eq.s32.totalorder %s17, 0
    %p90 = por %p88, %p89
    %p91 = scmp.ne.s32.totalorder %s77, %s78
    %p92 = scmp.eq.s32.totalorder %s18, 1
    %p93 = por %p91, %p92
    %p95 = scmp.ne.s32.totalorder %s78, %s94
    %p96 = scmp.eq.s32.totalorder %s18, 0
    %p97 = por %p95, %p96
    %s98 = ssub.s32 %s12, %s19
    %p99 = scmp.eq.s32.totalorder %s98, 0
    %s101 = sadd.s32 %s100, 1
    %s102 = scalar_select %p99, %s100, %s101
    %p105 = pneg %p99
    %p106 = scmp.eq.s32.totalorder %s12, 1
    %p107 = por %p105, %p106
    %p108 = scmp.ne.s32.totalorder %s100, %s103
    %p109 = scmp.eq.s32.totalorder %s12, 0
    %p110 = por %p108, %p109
    %p111 = scmp.ne.s32.totalorder %s100, %s103
    %p112 = scmp.eq.s32.totalorder %s17, 1
    %p113 = por %p111, %p112
    %p114 = scmp.ne.s32.totalorder %s103, %s104
    %p115 = scmp.eq.s32.totalorder %s17, 0
    %p116 = por %p114, %p115
    %p117 = scmp.ne.s32.totalorder %s103, %s104
    %p118 = scmp.eq.s32.totalorder %s18, 1
    %p119 = por %p117, %p118
    %p121 = scmp.ne.s32.totalorder %s104, %s120
    %p122 = scmp.eq.s32.totalorder %s18, 0
    %p123 = por %p121, %p122
    %s125 = sadd.s32 %s124, 1
    %p128 = scmp.eq.s32.totalorder %s12, 1
    %p129 = scmp.ne.s32.totalorder %s124, %s126
    %p130 = scmp.eq.s32.totalorder %s12, 0
    %p131 = por %p129, %p130
    %p132 = scmp.ne.s32.totalorder %s124, %s126
    %p133 = scmp.eq.s32.totalorder %s17, 1
    %p134 = por %p132, %p133
    %p135 = scmp.ne.s32.totalorder %s126, %s127
    %p136 = scmp.eq.s32.totalorder %s17, 0
    %p137 = por %p135, %p136
    %p138 = scmp.ne.s32.totalorder %s126, %s127
    %p139 = scmp.eq.s32.totalorder %s18, 1
    %p140 = por %p138, %p139
    %p142 = scmp.ne.s32.totalorder %s127, %s141
    %p143 = scmp.eq.s32.totalorder %s18, 0
    %p144 = por %p142, %p143
    %s146 = sadd.s32 %s145, 1
    %p149 = scmp.eq.s32.totalorder %s12, 1
    %p150 = scmp.ne.s32.totalorder %s145, %s147
    %p151 = scmp.eq.s32.totalorder %s12, 0
    %p152 = por %p150, %p151
    %p153 = scmp.ne.s32.totalorder %s145, %s147
    %p154 = scmp.eq.s32.totalorder %s17, 1
    %p155 = por %p153, %p154
    %p156 = scmp.ne.s32.totalorder %s147, %s148
    %p157 = scmp.eq.s32.totalorder %s17, 0
    %p158 = por %p156, %p157
    %p159 = scmp.ne.s32.totalorder %s147, %s148
    %p160 = scmp.eq.s32.totalorder %s18, 1
    %p161 = por %p159, %p160
    %p163 = scmp.ne.s32.totalorder %s148, %s162
    %p164 = scmp.eq.s32.totalorder %s18, 0
    %p165 = por %p163, %p164
    %s166 = ssub.s32 %s12, %s19
    %p167 = scmp.eq.s32.totalorder %s166, 0
    %s169 = sadd.s32 %s168, 1
    %s170 = scalar_select %p167, %s168, %s169
    %p173 = pneg %p167
    %p174 = scmp.eq.s32.totalorder %s12, 1
    %p175 = por %p173, %p174
    %p176 = scmp.ne.s32.totalorder %s168, %s171
    %p177 = scmp.eq.s32.totalorder %s12, 0
    %p178 = por %p176, %p177
    %p179 = scmp.ne.s32.totalorder %s168, %s171
    %p180 = scmp.eq.s32.totalorder %s17, 1
    %p181 = por %p179, %p180
    %p182 = scmp.ne.s32.totalorder %s171, %s172
    %p183 = scmp.eq.s32.totalorder %s17, 0
    %p184 = por %p182, %p183
    %p185 = scmp.ne.s32.totalorder %s171, %s172
    %p186 = scmp.eq.s32.totalorder %s18, 1
    %p187 = por %p185, %p186
    %p189 = scmp.ne.s32.totalorder %s172, %s188
    %p190 = scmp.eq.s32.totalorder %s18, 0
    %p191 = por %p189, %p190
    %p192 = scmp.le.s32.totalorder 1, %s12
    %p193 = scmp.lt.s32.totalorder %s12, 3
    %p194 = pnand %p192, %p193
    %p195 = pneg %p194
    // Predicated region
    $region9: #{vitdown_forward.1} parent=5 // pred_check
      _
    $region10: #{vitdown_forward.1} parent=5 // pred_check_branch
      %197 = sbr.rel (%p194) target = $region12
    $region11: #{vitdown_forward.1} parent=5 // pred_region
      %s198 = ssub.s32 %s12, 1
      // Predicated region
      $region13: #{vitdown_forward.1} parent=11 // pred_check
        %p199 = pneg %p137
      $region14: #{vitdown_forward.1} parent=11 // pred_check_branch
        %201 = sbr.rel (%p199) target = $region16
      $region15: #{vitdown_forward.1} parent=11 // pred_region
        _
      $region16: #{vitdown_forward.1} parent=11 // pred_fallthru
        _
      // Predicated region
      $region17: #{vitdown_forward.1} parent=11 // pred_check
        %p202 = pneg %p158
      $region18: #{vitdown_forward.1} parent=11 // pred_check_branch
        %204 = sbr.rel (%p202) target = $region20
      $region19: #{vitdown_forward.1} parent=11 // pred_region
        _
      $region20: #{vitdown_forward.1} parent=11 // pred_fallthru
        _
    $region12: #{vitdown_forward.1} parent=5 // pred_fallthru
      _
    %p205 = scmp.lt.s32.totalorder %s12, 2
    // Predicated region
    $region21: #{vitdown_forward.1} parent=5 // pred_check
      %p206 = pneg %p205
    $region22: #{vitdown_forward.1} parent=5 // pred_check_branch
      %208 = sbr.rel (%p206) target = $region24
    $region23: #{vitdown_forward.1} parent=5 // pred_region
      // Predicated region
      $region25: #{vitdown_forward.1} parent=23 // pred_check
        %p209 = pneg %p32
      $region26: #{vitdown_forward.1} parent=23 // pred_check_branch
        %211 = sbr.rel (%p209) target = $region28
      $region27: #{vitdown_forward.1} parent=23 // pred_region
        %p212 = scmp.lt.s32.totalorder %s12, 1
        %s213 = scalar_select %p212, %s12, 1
        %s214 = smul.addr %s213, 18
        %s215 = smul.addr %s214, 8
        %s216 = scalar_lea.vmem %s0, %s215
      $region28: #{vitdown_forward.1} parent=23 // pred_fallthru
        _
      // Predicated region
      $region29: #{vitdown_forward.1} parent=23 // pred_check
        %p217 = pneg %p58
      $region30: #{vitdown_forward.1} parent=23 // pred_check_branch
        %219 = sbr.rel (%p217) target = $region32
      $region31: #{vitdown_forward.1} parent=23 // pred_region
        %p220 = scmp.lt.s32.totalorder %s12, 1
        %s221 = scalar_select %p220, %s12, 1
        %s222 = smul.addr %s221, 18
        %s223 = smul.addr %s222, 8
        %s224 = scalar_lea.vmem %s1, %s223
      $region32: #{vitdown_forward.1} parent=23 // pred_fallthru
        _
      // Predicated region
      $region33: #{vitdown_forward.1} parent=23 // pred_check
        %p225 = pneg %p84
      $region34: #{vitdown_forward.1} parent=23 // pred_check_branch
        %227 = sbr.rel (%p225) target = $region36
      $region35: #{vitdown_forward.1} parent=23 // pred_region
        %p228 = scmp.lt.s32.totalorder %s12, 1
        %s229 = scalar_select %p228, %s12, 1
        %s230 = smul.addr %s229, 18
        %s231 = smul.addr %s230, 8
        %s232 = scalar_lea.vmem %s2, %s231
      $region36: #{vitdown_forward.1} parent=23 // pred_fallthru
        _
      // Predicated region
      $region37: #{vitdown_forward.1} parent=23 // pred_check
        %p233 = pneg %p110
      $region38: #{vitdown_forward.1} parent=23 // pred_check_branch
        %235 = sbr.rel (%p233) target = $region40
      $region39: #{vitdown_forward.1} parent=23 // pred_region
        %p236 = scmp.lt.s32.totalorder %s12, 1
        %s237 = scalar_select %p236, %s12, 1
        %s238 = smul.addr %s237, 18
        %s239 = smul.addr %s238, 8
        %s240 = scalar_lea.vmem %s3, %s239
      $region40: #{vitdown_forward.1} parent=23 // pred_fallthru
        _
    $region24: #{vitdown_forward.1} parent=5 // pred_fallthru
      _
    %p241 = scmp.le.s32.totalorder 1, %s12
    %p242 = scmp.lt.s32.totalorder %s12, 3
    %p243 = pnand %p241, %p242
    %p244 = pneg %p243
    // Predicated region
    $region41: #{vitdown_forward.1} parent=5 // pred_check
      _
    $region42: #{vitdown_forward.1} parent=5 // pred_check_branch
      %246 = sbr.rel (%p243) target = $region44
    $region43: #{vitdown_forward.1} parent=5 // pred_region
      %s247 = ssub.s32 %s12, 1
      %p248 = scmp.lt.s32.totalorder %s17, 1
      %s249 = scalar_select %p248, %s17, 1
      %s250 = smul.addr %s249, 18
      %s251 = smul.addr %s250, 8
      %s252 = scalar_lea.vmem %s0, %s251
      %p253 = pneg %p38
      %p254 = pneg %p35
      %p255 = scmp.lt.s32.totalorder %s17, 1
      %s256 = scalar_select %p255, %s17, 1
      %s257 = smul.addr %s256, 18
      %s258 = smul.addr %s257, 8
      %s259 = scalar_lea.vmem %s1, %s258
      %p260 = pneg %p64
      %p261 = pneg %p61
      %p262 = scmp.lt.s32.totalorder %s17, 1
      %s263 = scalar_select %p262, %s17, 1
      %s264 = smul.addr %s263, 18
      %s265 = smul.addr %s264, 8
      %s266 = scalar_lea.vmem %s2, %s265
      %p267 = pneg %p90
      %p268 = pneg %p87
      %p269 = scmp.lt.s32.totalorder %s17, 1
      %s270 = scalar_select %p269, %s17, 1
      %s271 = smul.addr %s270, 18
      %s272 = smul.addr %s271, 8
      %s273 = scalar_lea.vmem %s3, %s272
      %p274 = pneg %p116
      %p275 = pneg %p113
      %p276 = pneg %p137
      %p277 = pneg %p134
      %p278 = pneg %p158
      %p279 = pneg %p155
      %p280 = pneg %p184
      %p281 = pneg %p181
      %p282 = scmp.lt.s32.totalorder %s17, 1
      %s283 = scalar_select %p282, %s17, 1
      %s284 = smul.addr %s283, 8
      %s285 = smul.addr %s284, 8
      %s286 = scalar_lea.vmem %s6, %s285
      %p287 = scmp.lt.s32.totalorder %s17, 1
      %s288 = scalar_select %p287, %s17, 1
      %s289 = smul.addr %s288, 18
      %s290 = smul.addr %s289, 8
      %s291 = scalar_lea.vmem %s0, %s290
      %p292 = scmp.lt.s32.totalorder %s17, 1
      %s293 = scalar_select %p292, %s17, 1
      %s294 = smul.addr %s293, 18
      %s295 = smul.addr %s294, 8
      %s296 = scalar_lea.vmem %s1, %s295
      %p297 = scmp.lt.s32.totalorder %s17, 1
      %s298 = scalar_select %p297, %s17, 1
      %s299 = smul.addr %s298, 18
      %s300 = smul.addr %s299, 8
      %s301 = scalar_lea.vmem %s2, %s300
      %p302 = scmp.lt.s32.totalorder %s17, 1
      %s303 = scalar_select %p302, %s17, 1
      %s304 = smul.addr %s303, 18
      %s305 = smul.addr %s304, 8
      %s306 = scalar_lea.vmem %s3, %s305
      %p307 = scmp.lt.s32.totalorder %s17, 1
      %s308 = scalar_select %p307, %s17, 1
      %s309 = smul.addr %s308, 8
      %s310 = smul.addr %s309, 8
      %s311 = scalar_lea.vmem %s6, %s310
      %312 = vst [vmem:[#allocation2] sm:$0xff] 0.0
      %313 = vst [vmem:[#allocation2 + $0x8] sm:$0xff] 0.0
      %314 = vst [vmem:[#allocation2 + $0x10] sm:$0xff] 0.0
      %315 = vst [vmem:[#allocation2 + $0x18] sm:$0xff] 0.0
      %316 = vst [vmem:[#allocation2 + $0x20] sm:$0xff] 0.0
      %317 = vst [vmem:[#allocation2 + $0x28] sm:$0xff] 0.0
      %318 = vst [vmem:[#allocation2 + $0x30] sm:$0xff] 0.0
      %319 = vst [vmem:[#allocation2 + $0x38] sm:$0xff] 0.0
      %v320 = vld [vmem:[%s291] sm:$0xff]
      %v321 = vld [vmem:[%s291 + $0x8] sm:$0x1]
      %v322 = vld [vmem:[%s291 + $0x10] sm:$0xff]
      %v323 = vld [vmem:[%s291 + $0x18] sm:$0x1]
      %v324 = vld [vmem:[%s291 + $0x20] sm:$0xff]
      %v325 = vld [vmem:[%s291 + $0x28] sm:$0x1]
      %v326 = vld [vmem:[%s291 + $0x30] sm:$0xff]
      %v327 = vld [vmem:[%s291 + $0x38] sm:$0x1]
      %v328 = vld [vmem:[%s291 + $0x40] sm:$0xff]
      %v329 = vld [vmem:[%s291 + $0x48] sm:$0x1]
      %v330 = vld [vmem:[%s291 + $0x50] sm:$0xff]
      %v331 = vld [vmem:[%s291 + $0x58] sm:$0x1]
      %v332 = vld [vmem:[%s291 + $0x60] sm:$0xff]
      %v333 = vld [vmem:[%s291 + $0x68] sm:$0x1]
      %v334 = vld [vmem:[%s291 + $0x70] sm:$0xff]
      %v335 = vld [vmem:[%s291 + $0x78] sm:$0x1]
      %v336 = vld [vmem:[%s291 + $0x80] sm:$0xff]
      %v337 = vld [vmem:[%s291 + $0x88] sm:$0x1]
      %v338 = vld [vmem:[%s296] sm:$0xff]
      %v339 = vld [vmem:[%s296 + $0x10] sm:$0xff]
      %v340 = vld [vmem:[%s296 + $0x20] sm:$0xff]
      %v341 = vld [vmem:[%s296 + $0x30] sm:$0xff]
      %v342 = vld [vmem:[%s296 + $0x40] sm:$0xff]
      %v343 = vld [vmem:[%s296 + $0x50] sm:$0xff]
      %v344 = vld [vmem:[%s296 + $0x60] sm:$0xff]
      %v345 = vld [vmem:[%s296 + $0x70] sm:$0xff]
      %v346 = vld [vmem:[%s296 + $0x80] sm:$0xff]
      %v347 = vld [vmem:[%s301] sm:$0xff]
      %v348 = vld [vmem:[%s301 + $0x8] sm:$0x1]
      %v349 = vld [vmem:[%s301 + $0x10] sm:$0xff]
      %v350 = vld [vmem:[%s301 + $0x18] sm:$0x1]
      %v351 = vld [vmem:[%s301 + $0x20] sm:$0xff]
      %v352 = vld [vmem:[%s301 + $0x28] sm:$0x1]
      %v353 = vld [vmem:[%s301 + $0x30] sm:$0xff]
      %v354 = vld [vmem:[%s301 + $0x38] sm:$0x1]
      %v355 = vld [vmem:[%s301 + $0x40] sm:$0xff]
      %v356 = vld [vmem:[%s301 + $0x48] sm:$0x1]
      %v357 = vld [vmem:[%s301 + $0x50] sm:$0xff]
      %v358 = vld [vmem:[%s301 + $0x58] sm:$0x1]
      %v359 = vld [vmem:[%s301 + $0x60] sm:$0xff]
      %v360 = vld [vmem:[%s301 + $0x68] sm:$0x1]
      %v361 = vld [vmem:[%s301 + $0x70] sm:$0xff]
      %v362 = vld [vmem:[%s301 + $0x78] sm:$0x1]
      %v363 = vld [vmem:[%s306] sm:$0xff]
      %v364 = vld [vmem:[%s306 + $0x10] sm:$0xff]
      %v365 = vld [vmem:[%s306 + $0x20] sm:$0xff]
      %v366 = vld [vmem:[%s306 + $0x30] sm:$0xff]
      %v367 = vld [vmem:[%s306 + $0x40] sm:$0xff]
      %v368 = vld [vmem:[%s306 + $0x50] sm:$0xff]
      %v369 = vld [vmem:[%s306 + $0x60] sm:$0xff]
      %v370 = vld [vmem:[%s306 + $0x70] sm:$0xff]
      %v371 = vld [vmem:[%s4] sm:$0xf]
      %v372 = vld [vmem:[#allocation2] sm:$0xff]
      %v373 = vld [vmem:[#allocation2 + $0x8] sm:$0xff]
      %v374 = vld [vmem:[#allocation2 + $0x10] sm:$0xff]
      %v375 = vld [vmem:[#allocation2 + $0x18] sm:$0xff]
      %v376 = vld [vmem:[#allocation2 + $0x20] sm:$0xff]
      %v377 = vld [vmem:[#allocation2 + $0x28] sm:$0xff]
      %v378 = vld [vmem:[#allocation2 + $0x30] sm:$0xff]
      %v379 = vld [vmem:[#allocation2 + $0x38] sm:$0xff]
      %vm380 = vcmask 31744
      %v382 = vsel %vm380, %v320, 0
      %v385 = vsel %vm380, %v322, 0
      %v388 = vsel %vm380, %v324, 0
      %v391 = vsel %vm380, %v326, 0
      %v394 = vsel %vm380, %v328, 0
      %v397 = vsel %vm380, %v330, 0
      %v400 = vsel %vm380, %v332, 0
      %v403 = vsel %vm380, %v334, 0
      %vm405 = vcmask 1043456
      %v407 = vsel %vm405, %v371, 0
      %409 = vmatprep.subr.mxu0 0.0
      %410 = vmatpush1.msra.mxu0 %v407
      %411 = vmatprep.subr.mxu0 0.0
      %412 = vmatpush1.msra.mxu0 0.0
      %413 = vmatprep.subr.mxu0 0.0
      %414 = vmatpush1.msra.mxu0 0.0
      %415 = vmatprep.subr.mxu0 0.0
      %416 = vmatpush1.msra.mxu0 0.0
      %417 = vmatprep.subr.mxu0 0.0
      %418 = vmatpush1.msra.mxu0 0.0
      %419 = vmatprep.subr.mxu0 0.0
      %420 = vmatpush1.msra.mxu0 0.0
      %421 = vmatprep.subr.mxu0 0.0
      %422 = vmatpush1.msra.mxu0 0.0
      %423 = vmatprep.subr.mxu0 0.0
      %424 = vmatpush1.msra.mxu0 0.0
      %425 = vmatprep.subr.mxu0 0.0
      %426 = vmatpush1.msra.mxu0 0.0
      %427 = vmatprep.subr.mxu0 0.0
      %428 = vmatpush1.msra.mxu0 0.0
      %429 = vmatprep.subr.mxu0 0.0
      %430 = vmatpush1.msra.mxu0 0.0
      %431 = vmatprep.subr.mxu0 0.0
      %432 = vmatpush1.msra.mxu0 0.0
      %433 = vmatprep.subr.mxu0 0.0
      %434 = vmatpush1.msra.mxu0 0.0
      %435 = vmatprep.subr.mxu0 0.0
      %436 = vmatpush1.msra.mxu0 0.0
      %437 = vmatprep.subr.mxu0 0.0
      %438 = vmatpush1.msra.mxu0 0.0
      %439 = vmatprep.subr.mxu0 0.0
      %440 = vmatpush1.msra.mxu0 0.0
      %441 = vmatprep.subr.mxu0 0.0
      %442 = vmatpush1.msra.mxu0 0.0
      %443 = vmatprep.subr.mxu0 0.0
      %444 = vmatpush1.msra.mxu0 0.0
      %445 = vmatprep.subr.mxu0 0.0
      %446 = vmatpush1.msra.mxu0 0.0
      %447 = vmatprep.subr.mxu0 0.0
      %448 = vmatpush1.msra.mxu0 0.0
      %449 = vmatprep.subr.mxu0 0.0
      %450 = vmatpush1.msra.mxu0 0.0
      %451 = vmatprep.subr.mxu0 0.0
      %452 = vmatpush1.msra.mxu0 0.0
      %453 = vmatprep.subr.mxu0 0.0
      %454 = vmatpush1.msra.mxu0 0.0
      %455 = vmatprep.subr.mxu0 0.0
      %456 = vmatpush1.msra.mxu0 0.0
      %457 = vmatprep.subr.mxu0 0.0
      %458 = vmatpush1.msra.mxu0 0.0
      %459 = vmatprep.subr.mxu0 0.0
      %460 = vmatpush1.msra.mxu0 0.0
      %461 = vmatprep.subr.mxu0 0.0
      %462 = vmatpush1.msra.mxu0 0.0
      %463 = vmatprep.subr.mxu0 0.0
      %464 = vmatpush1.msra.mxu0 0.0
      %465 = vmatprep.subr.mxu0 0.0
      %466 = vmatpush1.msra.mxu0 0.0
      %467 = vmatprep.subr.mxu0 0.0
      %468 = vmatpush1.msra.mxu0 0.0
      %469 = vmatprep.subr.mxu0 0.0
      %470 = vmatpush1.msra.mxu0 0.0
      %471 = vmatprep.subr.mxu0 0.0
      %472 = vmatpush1.msra.mxu0 0.0
      %473 = vmatprep.mubr.f32.mxu0 0.0
      %474 = vmatmul.mubr.f32.gmra.mrb[0].mxu0 %v382
      %v475 = vpop.f32.mrb[0].mxu0
      %v476 = vadd.f32 0.0, %v475
      %v477 = vpop.f32.mrb[0].mxu0
      %478 = vmatprep.mubr.f32.mxu0 0.0
      %479 = vmatmul.mubr.f32.gmra.mrb[0].mxu0 %v385
      %v480 = vpop.f32.mrb[0].mxu0
      %v481 = vadd.f32 0.0, %v480
      %v482 = vpop.f32.mrb[0].mxu0
      %483 = vmatprep.mubr.f32.mxu0 0.0
      %484 = vmatmul.mubr.f32.gmra.mrb[0].mxu0 %v388
      %v485 = vpop.f32.mrb[0].mxu0
      %v486 = vadd.f32 0.0, %v485
      %v487 = vpop.f32.mrb[0].mxu0
      %488 = vmatprep.mubr.f32.mxu0 0.0
      %489 = vmatmul.mubr.f32.gmra.mrb[0].mxu0 %v391
      %v490 = vpop.f32.mrb[0].mxu0
      %v491 = vadd.f32 0.0, %v490
      %v492 = vpop.f32.mrb[0].mxu0
      %493 = vmatprep.mubr.f32.mxu0 0.0
      %494 = vmatmul.mubr.f32.gmra.mrb[0].mxu0 %v394
      %v495 = vpop.f32.mrb[0].mxu0
      %v496 = vadd.f32 0.0, %v495
      %v497 = vpop.f32.mrb[0].mxu0
      %498 = vmatprep.mubr.f32.mxu0 0.0
      %499 = vmatmul.mubr.f32.gmra.mrb[0].mxu0 %v397
      %v500 = vpop.f32.mrb[0].mxu0
      %v501 = vadd.f32 0.0, %v500
      %v502 = vpop.f32.mrb[0].mxu0
      %503 = vmatprep.mubr.f32.mxu0 0.0
      %504 = vmatmul.mubr.f32.gmra.mrb[0].mxu0 %v400
      %v505 = vpop.f32.mrb[0].mxu0
      %v506 = vadd.f32 0.0, %v505
      %v507 = vpop.f32.mrb[0].mxu0
      %508 = vmatprep.mubr.f32.mxu0 0.0
      %509 = vmatmul.mubr.f32.gmra.mrb[0].mxu0 %v403
      %v510 = vpop.f32.mrb[0].mxu0
      %v511 = vadd.f32 0.0, %v510
      %v512 = vpop.f32.mrb[0].mxu0
      %513 = vdwg.mxu0
      %v514 = vadd.f32 %v372, %v476
      %v515 = vadd.f32 %v373, %v481
      %v516 = vadd.f32 %v374, %v486
      %v517 = vadd.f32 %v375, %v491
      %v518 = vadd.f32 %v376, %v496
      %v519 = vadd.f32 %v377, %v501
      %v520 = vadd.f32 %v378, %v506
      %v521 = vadd.f32 %v379, %v511
      %522 = vst [vmem:[#allocation2] sm:$0xff] %v514
      %523 = vst [vmem:[#allocation2 + $0x8] sm:$0xff] %v515
      %524 = vst [vmem:[#allocation2 + $0x10] sm:$0xff] %v516
      %525 = vst [vmem:[#allocation2 + $0x18] sm:$0xff] %v517
      %526 = vst [vmem:[#allocation2 + $0x20] sm:$0xff] %v518
      %527 = vst [vmem:[#allocation2 + $0x28] sm:$0xff] %v519
      %528 = vst [vmem:[#allocation2 + $0x30] sm:$0xff] %v520
      %529 = vst [vmem:[#allocation2 + $0x38] sm:$0xff] %v521
      %s530 = scalar_lea.vmem %s4, 4
      %v531 = vld [vmem:[%s530] sm:$0xf]
      %v532 = vld [vmem:[#allocation2] sm:$0xff]
      %v533 = vld [vmem:[#allocation2 + $0x8] sm:$0xff]
      %v534 = vld [vmem:[#allocation2 + $0x10] sm:$0xff]
      %v535 = vld [vmem:[#allocation2 + $0x18] sm:$0xff]
      %v536 = vld [vmem:[#allocation2 + $0x20] sm:$0xff]
      %v537 = vld [vmem:[#allocation2 + $0x28] sm:$0xff]
      %v538 = vld [vmem:[#allocation2 + $0x30] sm:$0xff]
      %v539 = vld [vmem:[#allocation2 + $0x38] sm:$0xff]
      %v541 = vsel %vm380, %v338, 0
      %v544 = vsel %vm380, %v339, 0
      %v547 = vsel %vm380, %v340, 0
      %v550 = vsel %vm380, %v341, 0
      %v553 = vsel %vm380, %v342, 0
      %v556 = vsel %vm380, %v343, 0
      %v559 = vsel %vm380, %v344, 0
      %v562 = vsel %vm380, %v345, 0
      %v565 = vsel %vm405, %v531, 0
      %567 = vmatprep.subr.mxu0 0.0
      %568 = vmatpush1.msra.mxu0 %v565
      %569 = vmatprep.subr.mxu0 0.0
      %570 = vmatpush1.msra.mxu0 0.0
      %571 = vmatprep.subr.mxu0 0.0
      %572 = vmatpush1.msra.mxu0 0.0
      %573 = vmatprep.subr.mxu0 0.0
      %574 = vmatpush1.msra.mxu0 0.0
      %575 = vmatprep.subr.mxu0 0.0
      %576 = vmatpush1.msra.mxu0 0.0
      %577 = vmatprep.subr.mxu0 0.0
      %578 = vmatpush1.msra.mxu0 0.0
      %579 = vmatprep.subr.mxu0 0.0
      %580 = vmatpush1.msra.mxu0 0.0
      %581 = vmatprep.subr.mxu0 0.0
      %582 = vmatpush1.msra.mxu0 0.0
      %583 = vmatprep.subr.mxu0 0.0
      %584 = vmatpush1.msra.mxu0 0.0
      %585 = vmatprep.subr.mxu0 0.0
      %586 = vmatpush1.msra.mxu0 0.0
      %587 = vmatprep.subr.mxu0 0.0
      %588 = vmatpush1.msra.mxu0 0.0
      %589 = vmatprep.subr.mxu0 0.0
      %590 = vmatpush1.msra.mxu0 0.0
      %591 = vmatprep.subr.mxu0 0.0
      %592 = vmatpush1.msra.mxu0 0.0
      %593 = vmatprep.subr.mxu0 0.0
      %594 = vmatpush1.msra.mxu0 0.0
      %595 = vmatprep.subr.mxu0 0.0
      %596 = vmatpush1.msra.mxu0 0.0
      %597 = vmatprep.subr.mxu0 0.0
      %598 = vmatpush1.msra.mxu0 0.0
      %599 = vmatprep.subr.mxu0 0.0
      %600 = vmatpush1.msra.mxu0 0.0
      %601 = vmatprep.subr.mxu0 0.0
      %602 = vmatpush1.msra.mxu0 0.0
      %603 = vmatprep.subr.mxu0 0.0
      %604 = vmatpush1.msra.mxu0 0.0
      %605 = vmatprep.subr.mxu0 0.0
      %606 = vmatpush1.msra.mxu0 0.0
      %607 = vmatprep.subr.mxu0 0.0
      %608 = vmatpush1.msra.mxu0 0.0
      %609 = vmatprep.subr.mxu0 0.0
      %610 = vmatpush1.msra.mxu0 0.0
      %611 = vmatprep.subr.mxu0 0.0
      %612 = vmatpush1.msra.mxu0 0.0
      %613 = vmatprep.subr.mxu0 0.0
      %614 = vmatpush1.msra.mxu0 0.0
      %615 = vmatprep.subr.mxu0 0.0
      %616 = vmatpush1.msra.mxu0 0.0
      %617 = vmatprep.subr.mxu0 0.0
      %618 = vmatpush1.msra.mxu0 0.0
      %619 = vmatprep.subr.mxu0 0.0
      %620 = vmatpush1.msra.mxu0 0.0
      %621 = vmatprep.subr.mxu0 0.0
      %622 = vmatpush1.msra.mxu0 0.0
      %623 = vmatprep.subr.mxu0 0.0
      %624 = vmatpush1.msra.mxu0 0.0
      %625 = vmatprep.subr.mxu0 0.0
      %626 = vmatpush1.msra.mxu0 0.0
      %627 = vmatprep.subr.mxu0 0.0
      %628 = vmatpush1.msra.mxu0 0.0
      %629 = vmatprep.subr.mxu0 0.0
      %630 = vmatpush1.msra.mxu0 0.0
      %631 = vmatprep.mubr.f32.mxu0 0.0
      %632 = vmatmul.mubr.f32.gmra.mrb[0].mxu0 %v541
      %v633 = vpop.f32.mrb[0].mxu0
      %v634 = vadd.f32 0.0, %v633
      %v635 = vpop.f32.mrb[0].mxu0
      %636 = vmatprep.mubr.f32.mxu0 0.0
      %637 = vmatmul.mubr.f32.gmra.mrb[0].mxu0 %v544
      %v638 = vpop.f32.mrb[0].mxu0
      %v639 = vadd.f32 0.0, %v638
      %v640 = vpop.f32.mrb[0].mxu0
      %641 = vmatprep.mubr.f32.mxu0 0.0
      %642 = vmatmul.mubr.f32.gmra.mrb[0].mxu0 %v547
      %v643 = vpop.f32.mrb[0].mxu0
      %v644 = vadd.f32 0.0, %v643
      %v645 = vpop.f32.mrb[0].mxu0
      %646 = vmatprep.mubr.f32.mxu0 0.0
      %647 = vmatmul.mubr.f32.gmra.mrb[0].mxu0 %v550
      %v648 = vpop.f32.mrb[0].mxu0
      %v649 = vadd.f32 0.0, %v648
      %v650 = vpop.f32.mrb[0].mxu0
      %651 = vmatprep.mubr.f32.mxu0 0.0
      %652 = vmatmul.mubr.f32.gmra.mrb[0].mxu0 %v553
      %v653 = vpop.f32.mrb[0].mxu0
      %v654 = vadd.f32 0.0, %v653
      %v655 = vpop.f32.mrb[0].mxu0
      %656 = vmatprep.mubr.f32.mxu0 0.0
      %657 = vmatmul.mubr.f32.gmra.mrb[0].mxu0 %v556
      %v658 = vpop.f32.mrb[0].mxu0
      %v659 = vadd.f32 0.0, %v658
      %v660 = vpop.f32.mrb[0].mxu0
      %661 = vmatprep.mubr.f32.mxu0 0.0
      %662 = vmatmul.mubr.f32.gmra.mrb[0].mxu0 %v559
      %v663 = vpop.f32.mrb[0].mxu0
      %v664 = vadd.f32 0.0, %v663
      %v665 = vpop.f32.mrb[0].mxu0
      %666 = vmatprep.mubr.f32.mxu0 0.0
      %667 = vmatmul.mubr.f32.gmra.mrb[0].mxu0 %v562
      %v668 = vpop.f32.mrb[0].mxu0
      %v669 = vadd.f32 0.0, %v668
      %v670 = vpop.f32.mrb[0].mxu0
      %671 = vdwg.mxu0
      %v672 = vadd.f32 %v532, %v634
      %v673 = vadd.f32 %v533, %v639
      %v674 = vadd.f32 %v534, %v644
      %v675 = vadd.f32 %v535, %v649
      %v676 = vadd.f32 %v536, %v654
      %v677 = vadd.f32 %v537, %v659
      %v678 = vadd.f32 %v538, %v664
      %v679 = vadd.f32 %v539, %v669
      %680 = vst [vmem:[#allocation2] sm:$0xff] %v672
      %681 = vst [vmem:[#allocation2 + $0x8] sm:$0xff] %v673
      %682 = vst [vmem:[#allocation2 + $0x10] sm:$0xff] %v674
      %683 = vst [vmem:[#allocation2 + $0x18] sm:$0xff] %v675
      %684 = vst [vmem:[#allocation2 + $0x20] sm:$0xff] %v676
      %685 = vst [vmem:[#allocation2 + $0x28] sm:$0xff] %v677
      %686 = vst [vmem:[#allocation2 + $0x30] sm:$0xff] %v678
      %687 = vst [vmem:[#allocation2 + $0x38] sm:$0xff] %v679
      %vm696 = vcmask 1046528
      %v697 = vrot.slane %v320, 1
      %v698 = vrot.slane %v321, 1
      %v699 = vsel %vm696, %v697, %v698
      %v700 = vrot.slane %v322, 1
      %v701 = vrot.slane %v323, 1
      %v702 = vsel %vm696, %v700, %v701
      %v703 = vrot.slane %v324, 1
      %v704 = vrot.slane %v325, 1
      %v705 = vsel %vm696, %v703, %v704
      %v706 = vrot.slane %v326, 1
      %v707 = vrot.slane %v327, 1
      %v708 = vsel %vm696, %v706, %v707
      %v709 = vrot.slane %v328, 1
      %v710 = vrot.slane %v329, 1
      %v711 = vsel %vm696, %v709, %v710
      %v712 = vrot.slane %v330, 1
      %v713 = vrot.slane %v331, 1
      %v714 = vsel %vm696, %v712, %v713
      %v715 = vrot.slane %v332, 1
      %v716 = vrot.slane %v333, 1
      %v717 = vsel %vm696, %v715, %v716
      %v718 = vrot.slane %v334, 1
      %v719 = vrot.slane %v335, 1
      %v720 = vsel %vm696, %v718, %v719
      %s721 = scalar_lea.vmem %s4, 8
      %v722 = vld [vmem:[%s721] sm:$0xf]
      %v723 = vld [vmem:[#allocation2] sm:$0xff]
      %v724 = vld [vmem:[#allocation2 + $0x8] sm:$0xff]
      %v725 = vld [vmem:[#allocation2 + $0x10] sm:$0xff]
      %v726 = vld [vmem:[#allocation2 + $0x18] sm:$0xff]
      %v727 = vld [vmem:[#allocation2 + $0x20] sm:$0xff]
      %v728 = vld [vmem:[#allocation2 + $0x28] sm:$0xff]
      %v729 = vld [vmem:[#allocation2 + $0x30] sm:$0xff]
      %v730 = vld [vmem:[#allocation2 + $0x38] sm:$0xff]
      %v731 = vsel %vm380, %v699, 0
      %v733 = vsel %vm380, %v702, 0
      %v735 = vsel %vm380, %v705, 0
      %v737 = vsel %vm380, %v708, 0
      %v739 = vsel %vm380, %v711, 0
      %v741 = vsel %vm380, %v714, 0
      %v743 = vsel %vm380, %v717, 0
      %v745 = vsel %vm380, %v720, 0
      %v748 = vsel %vm405, %v722, 0
      %750 = vmatprep.subr.mxu0 0.0
      %751 = vmatpush1.msra.mxu0 %v748
      %752 = vmatprep.subr.mxu0 0.0
      %753 = vmatpush1.msra.mxu0 0.0
      %754 = vmatprep.subr.mxu0 0.0
      %755 = vmatpush1.msra.mxu0 0.0
      %756 = vmatprep.subr.mxu0 0.0
      %757 = vmatpush1.msra.mxu0 0.0
      %758 = vmatprep.subr.mxu0 0.0
      %759 = vmatpush1.msra.mxu0 0.0
      %760 = vmatprep.subr.mxu0 0.0
      %761 = vmatpush1.msra.mxu0 0.0
      %762 = vmatprep.subr.mxu0 0.0
      %763 = vmatpush1.msra.mxu0 0.0
      %764 = vmatprep.subr.mxu0 0.0
      %765 = vmatpush1.msra.mxu0 0.0
      %766 = vmatprep.subr.mxu0 0.0
      %767 = vmatpush1.msra.mxu0 0.0
      %768 = vmatprep.subr.mxu0 0.0
      %769 = vmatpush1.msra.mxu0 0.0
      %770 = vmatprep.subr.mxu0 0.0
      %771 = vmatpush1.msra.mxu0 0.0
      %772 = vmatprep.subr.mxu0 0.0
      %773 = vmatpush1.msra.mxu0 0.0
      %774 = vmatprep.subr.mxu0 0.0
      %775 = vmatpush1.msra.mxu0 0.0
      %776 = vmatprep.subr.mxu0 0.0
      %777 = vmatpush1.msra.mxu0 0.0
      %778 = vmatprep.subr.mxu0 0.0
      %779 = vmatpush1.msra.mxu0 0.0
      %780 = vmatprep.subr.mxu0 0.0
      %781 = vmatpush1.msra.mxu0 0.0
      %782 = vmatprep.subr.mxu0 0.0
      %783 = vmatpush1.msra.mxu0 0.0
      %784 = vmatprep.subr.mxu0 0.0
      %785 = vmatpush1.msra.mxu0 0.0
      %786 = vmatprep.subr.mxu0 0.0
      %787 = vmatpush1.msra.mxu0 0.0
      %788 = vmatprep.subr.mxu0 0.0
      %789 = vmatpush1.msra.mxu0 0.0
      %790 = vmatprep.subr.mxu0 0.0
      %791 = vmatpush1.msra.mxu0 0.0
      %792 = vmatprep.subr.mxu0 0.0
      %793 = vmatpush1.msra.mxu0 0.0
      %794 = vmatprep.subr.mxu0 0.0
      %795 = vmatpush1.msra.mxu0 0.0
      %796 = vmatprep.subr.mxu0 0.0
      %797 = vmatpush1.msra.mxu0 0.0
      %798 = vmatprep.subr.mxu0 0.0
      %799 = vmatpush1.msra.mxu0 0.0
      %800 = vmatprep.subr.mxu0 0.0
      %801 = vmatpush1.msra.mxu0 0.0
      %802 = vmatprep.subr.mxu0 0.0
      %803 = vmatpush1.msra.mxu0 0.0
      %804 = vmatprep.subr.mxu0 0.0
      %805 = vmatpush1.msra.mxu0 0.0
      %806 = vmatprep.subr.mxu0 0.0
      %807 = vmatpush1.msra.mxu0 0.0
      %808 = vmatprep.subr.mxu0 0.0
      %809 = vmatpush1.msra.mxu0 0.0
      %810 = vmatprep.subr.mxu0 0.0
      %811 = vmatpush1.msra.mxu0 0.0
      %812 = vmatprep.subr.mxu0 0.0
      %813 = vmatpush1.msra.mxu0 0.0
      %814 = vmatprep.mubr.f32.mxu0 0.0
      %815 = vmatmul.mubr.f32.gmra.mrb[0].mxu0 %v731
      %v816 = vpop.f32.mrb[0].mxu0
      %v817 = vadd.f32 0.0, %v816
      %v818 = vpop.f32.mrb[0].mxu0
      %819 = vmatprep.mubr.f32.mxu0 0.0
      %820 = vmatmul.mubr.f32.gmra.mrb[0].mxu0 %v733
      %v821 = vpop.f32.mrb[0].mxu0
      %v822 = vadd.f32 0.0, %v821
      %v823 = vpop.f32.mrb[0].mxu0
      %824 = vmatprep.mubr.f32.mxu0 0.0
      %825 = vmatmul.mubr.f32.gmra.mrb[0].mxu0 %v735
      %v826 = vpop.f32.mrb[0].mxu0
      %v827 = vadd.f32 0.0, %v826
      %v828 = vpop.f32.mrb[0].mxu0
      %829 = vmatprep.mubr.f32.mxu0 0.0
      %830 = vmatmul.mubr.f32.gmra.mrb[0].mxu0 %v737
      %v831 = vpop.f32.mrb[0].mxu0
      %v832 = vadd.f32 0.0, %v831
      %v833 = vpop.f32.mrb[0].mxu0
      %834 = vmatprep.mubr.f32.mxu0 0.0
      %835 = vmatmul.mubr.f32.gmra.mrb[0].mxu0 %v739
      %v836 = vpop.f32.mrb[0].mxu0
      %v837 = vadd.f32 0.0, %v836
      %v838 = vpop.f32.mrb[0].mxu0
      %839 = vmatprep.mubr.f32.mxu0 0.0
      %840 = vmatmul.mubr.f32.gmra.mrb[0].mxu0 %v741
      %v841 = vpop.f32.mrb[0].mxu0
      %v842 = vadd.f32 0.0, %v841
      %v843 = vpop.f32.mrb[0].mxu0
      %844 = vmatprep.mubr.f32.mxu0 0.0
      %845 = vmatmul.mubr.f32.gmra.mrb[0].mxu0 %v743
      %v846 = vpop.f32.mrb[0].mxu0
      %v847 = vadd.f32 0.0, %v846
      %v848 = vpop.f32.mrb[0].mxu0
      %849 = vmatprep.mubr.f32.mxu0 0.0
      %850 = vmatmul.mubr.f32.gmra.mrb[0].mxu0 %v745
      %v851 = vpop.f32.mrb[0].mxu0
      %v852 = vadd.f32 0.0, %v851
      %v853 = vpop.f32.mrb[0].mxu0
      %854 = vdwg.mxu0
      %v855 = vadd.f32 %v723, %v817
      %v856 = vadd.f32 %v724, %v822
      %v857 = vadd.f32 %v725, %v827
      %v858 = vadd.f32 %v726, %v832
      %v859 = vadd.f32 %v727, %v837
      %v860 = vadd.f32 %v728, %v842
      %v861 = vadd.f32 %v729, %v847
      %v862 = vadd.f32 %v730, %v852
      %863 = vst [vmem:[#allocation2] sm:$0xff] %v855
      %864 = vst [vmem:[#allocation2 + $0x8] sm:$0xff] %v856
      %865 = vst [vmem:[#allocation2 + $0x10] sm:$0xff] %v857
      %866 = vst [vmem:[#allocation2 + $0x18] sm:$0xff] %v858
      %867 = vst [vmem:[#allocation2 + $0x20] sm:$0xff] %v859
      %868 = vst [vmem:[#allocation2 + $0x28] sm:$0xff] %v860
      %869 = vst [vmem:[#allocation2 + $0x30] sm:$0xff] %v861
      %870 = vst [vmem:[#allocation2 + $0x38] sm:$0xff] %v862
      %s871 = scalar_lea.vmem %s4, 12
      %v872 = vld [vmem:[%s871] sm:$0xf]
      %v873 = vld [vmem:[#allocation2] sm:$0xff]
      %v874 = vld [vmem:[#allocation2 + $0x8] sm:$0xff]
      %v875 = vld [vmem:[#allocation2 + $0x10] sm:$0xff]
      %v876 = vld [vmem:[#allocation2 + $0x18] sm:$0xff]
      %v877 = vld [vmem:[#allocation2 + $0x20] sm:$0xff]
      %v878 = vld [vmem:[#allocation2 + $0x28] sm:$0xff]
      %v879 = vld [vmem:[#allocation2 + $0x30] sm:$0xff]
      %v880 = vld [vmem:[#allocation2 + $0x38] sm:$0xff]
      %v882 = vsel %vm380, %v347, 0
      %v885 = vsel %vm380, %v349, 0
      %v888 = vsel %vm380, %v351, 0
      %v891 = vsel %vm380, %v353, 0
      %v894 = vsel %vm380, %v355, 0
      %v897 = vsel %vm380, %v357, 0
      %v900 = vsel %vm380, %v359, 0
      %v903 = vsel %vm380, %v361, 0
      %v906 = vsel %vm405, %v872, 0
      %908 = vmatprep.subr.mxu0 0.0
      %909 = vmatpush1.msra.mxu0 %v906
      %910 = vmatprep.subr.mxu0 0.0
      %911 = vmatpush1.msra.mxu0 0.0
      %912 = vmatprep.subr.mxu0 0.0
      %913 = vmatpush1.msra.mxu0 0.0
      %914 = vmatprep.subr.mxu0 0.0
      %915 = vmatpush1.msra.mxu0 0.0
      %916 = vmatprep.subr.mxu0 0.0
      %917 = vmatpush1.msra.mxu0 0.0
      %918 = vmatprep.subr.mxu0 0.0
      %919 = vmatpush1.msra.mxu0 0.0
      %920 = vmatprep.subr.mxu0 0.0
      %921 = vmatpush1.msra.mxu0 0.0
      %922 = vmatprep.subr.mxu0 0.0
      %923 = vmatpush1.msra.mxu0 0.0
      %924 = vmatprep.subr.mxu0 0.0
      %925 = vmatpush1.msra.mxu0 0.0
      %926 = vmatprep.subr.mxu0 0.0
      %927 = vmatpush1.msra.mxu0 0.0
      %928 = vmatprep.subr.mxu0 0.0
      %929 = vmatpush1.msra.mxu0 0.0
      %930 = vmatprep.subr.mxu0 0.0
      %931 = vmatpush1.msra.mxu0 0.0
      %932 = vmatprep.subr.mxu0 0.0
      %933 = vmatpush1.msra.mxu0 0.0
      %934 = vmatprep.subr.mxu0 0.0
      %935 = vmatpush1.msra.mxu0 0.0
      %936 = vmatprep.subr.mxu0 0.0
      %937 = vmatpush1.msra.mxu0 0.0
      %938 = vmatprep.subr.mxu0 0.0
      %939 = vmatpush1.msra.mxu0 0.0
      %940 = vmatprep.subr.mxu0 0.0
      %941 = vmatpush1.msra.mxu0 0.0
      %942 = vmatprep.subr.mxu0 0.0
      %943 = vmatpush1.msra.mxu0 0.0
      %944 = vmatprep.subr.mxu0 0.0
      %945 = vmatpush1.msra.mxu0 0.0
      %946 = vmatprep.subr.mxu0 0.0
      %947 = vmatpush1.msra.mxu0 0.0
      %948 = vmatprep.subr.mxu0 0.0
      %949 = vmatpush1.msra.mxu0 0.0
      %950 = vmatprep.subr.mxu0 0.0
      %951 = vmatpush1.msra.mxu0 0.0
      %952 = vmatprep.subr.mxu0 0.0
      %953 = vmatpush1.msra.mxu0 0.0
      %954 = vmatprep.subr.mxu0 0.0
      %955 = vmatpush1.msra.mxu0 0.0
      %956 = vmatprep.subr.mxu0 0.0
      %957 = vmatpush1.msra.mxu0 0.0
      %958 = vmatprep.subr.mxu0 0.0
      %959 = vmatpush1.msra.mxu0 0.0
      %960 = vmatprep.subr.mxu0 0.0
      %961 = vmatpush1.msra.mxu0 0.0
      %962 = vmatprep.subr.mxu0 0.0
      %963 = vmatpush1.msra.mxu0 0.0
      %964 = vmatprep.subr.mxu0 0.0
      %965 = vmatpush1.msra.mxu0 0.0
      %966 = vmatprep.subr.mxu0 0.0
      %967 = vmatpush1.msra.mxu0 0.0
      %968 = vmatprep.subr.mxu0 0.0
      %969 = vmatpush1.msra.mxu0 0.0
      %970 = vmatprep.subr.mxu0 0.0
      %971 = vmatpush1.msra.mxu0 0.0
      %972 = vmatprep.mubr.f32.mxu0 0.0
      %973 = vmatmul.mubr.f32.gmra.mrb[0].mxu0 %v882
      %v974 = vpop.f32.mrb[0].mxu0
      %v975 = vadd.f32 0.0, %v974
      %v976 = vpop.f32.mrb[0].mxu0
      %977 = vmatprep.mubr.f32.mxu0 0.0
      %978 = vmatmul.mubr.f32.gmra.mrb[0].mxu0 %v885
      %v979 = vpop.f32.mrb[0].mxu0
      %v980 = vadd.f32 0.0, %v979
      %v981 = vpop.f32.mrb[0].mxu0
      %982 = vmatprep.mubr.f32.mxu0 0.0
      %983 = vmatmul.mubr.f32.gmra.mrb[0].mxu0 %v888
      %v984 = vpop.f32.mrb[0].mxu0
      %v985 = vadd.f32 0.0, %v984
      %v986 = vpop.f32.mrb[0].mxu0
      %987 = vmatprep.mubr.f32.mxu0 0.0
      %988 = vmatmul.mubr.f32.gmra.mrb[0].mxu0 %v891
      %v989 = vpop.f32.mrb[0].mxu0
      %v990 = vadd.f32 0.0, %v989
      %v991 = vpop.f32.mrb[0].mxu0
      %992 = vmatprep.mubr.f32.mxu0 0.0
      %993 = vmatmul.mubr.f32.gmra.mrb[0].mxu0 %v894
      %v994 = vpop.f32.mrb[0].mxu0
      %v995 = vadd.f32 0.0, %v994
      %v996 = vpop.f32.mrb[0].mxu0
      %997 = vmatprep.mubr.f32.mxu0 0.0
      %998 = vmatmul.mubr.f32.gmra.mrb[0].mxu0 %v897
      %v999 = vpop.f32.mrb[0].mxu0
      %v1000 = vadd.f32 0.0, %v999
      %v1001 = vpop.f32.mrb[0].mxu0
      %1002 = vmatprep.mubr.f32.mxu0 0.0
      %1003 = vmatmul.mubr.f32.gmra.mrb[0].mxu0 %v900
      %v1004 = vpop.f32.mrb[0].mxu0
      %v1005 = vadd.f32 0.0, %v1004
      %v1006 = vpop.f32.mrb[0].mxu0
      %1007 = vmatprep.mubr.f32.mxu0 0.0
      %1008 = vmatmul.mubr.f32.gmra.mrb[0].mxu0 %v903
      %v1009 = vpop.f32.mrb[0].mxu0
      %v1010 = vadd.f32 0.0, %v1009
      %v1011 = vpop.f32.mrb[0].mxu0
      %1012 = vdwg.mxu0
      %v1013 = vadd.f32 %v873, %v975
      %v1014 = vadd.f32 %v874, %v980
      %v1015 = vadd.f32 %v875, %v985
      %v1016 = vadd.f32 %v876, %v990
      %v1017 = vadd.f32 %v877, %v995
      %v1018 = vadd.f32 %v878, %v1000
      %v1019 = vadd.f32 %v879, %v1005
      %v1020 = vadd.f32 %v880, %v1010
      %1021 = vst [vmem:[#allocation2] sm:$0xff] %v1013
      %1022 = vst [vmem:[#allocation2 + $0x8] sm:$0xff] %v1014
      %1023 = vst [vmem:[#allocation2 + $0x10] sm:$0xff] %v1015
      %1024 = vst [vmem:[#allocation2 + $0x18] sm:$0xff] %v1016
      %1025 = vst [vmem:[#allocation2 + $0x20] sm:$0xff] %v1017
      %1026 = vst [vmem:[#allocation2 + $0x28] sm:$0xff] %v1018
      %1027 = vst [vmem:[#allocation2 + $0x30] sm:$0xff] %v1019
      %1028 = vst [vmem:[#allocation2 + $0x38] sm:$0xff] %v1020
      %s1029 = scalar_lea.vmem %s4, 16
      %v1030 = vld [vmem:[%s1029] sm:$0xf]
      %v1031 = vld [vmem:[#allocation2] sm:$0xff]
      %v1032 = vld [vmem:[#allocation2 + $0x8] sm:$0xff]
      %v1033 = vld [vmem:[#allocation2 + $0x10] sm:$0xff]
      %v1034 = vld [vmem:[#allocation2 + $0x18] sm:$0xff]
      %v1035 = vld [vmem:[#allocation2 + $0x20] sm:$0xff]
      %v1036 = vld [vmem:[#allocation2 + $0x28] sm:$0xff]
      %v1037 = vld [vmem:[#allocation2 + $0x30] sm:$0xff]
      %v1038 = vld [vmem:[#allocation2 + $0x38] sm:$0xff]
      %v1040 = vsel %vm380, %v363, 0
      %v1043 = vsel %vm380, %v364, 0
      %v1046 = vsel %vm380, %v365, 0
      %v1049 = vsel %vm380, %v366, 0
      %v1052 = vsel %vm380, %v367, 0
      %v1055 = vsel %vm380, %v368, 0
      %v1058 = vsel %vm380, %v369, 0
      %v1061 = vsel %vm380, %v370, 0
      %v1064 = vsel %vm405, %v1030, 0
      %1066 = vmatprep.subr.mxu0 0.0
      %1067 = vmatpush1.msra.mxu0 %v1064
      %1068 = vmatprep.subr.mxu0 0.0
      %1069 = vmatpush1.msra.mxu0 0.0
      %1070 = vmatprep.subr.mxu0 0.0
      %1071 = vmatpush1.msra.mxu0 0.0
      %1072 = vmatprep.subr.mxu0 0.0
      %1073 = vmatpush1.msra.mxu0 0.0
      %1074 = vmatprep.subr.mxu0 0.0
      %1075 = vmatpush1.msra.mxu0 0.0
      %1076 = vmatprep.subr.mxu0 0.0
      %1077 = vmatpush1.msra.mxu0 0.0
      %1078 = vmatprep.subr.mxu0 0.0
      %1079 = vmatpush1.msra.mxu0 0.0
      %1080 = vmatprep.subr.mxu0 0.0
      %1081 = vmatpush1.msra.mxu0 0.0
      %1082 = vmatprep.subr.mxu0 0.0
      %1083 = vmatpush1.msra.mxu0 0.0
      %1084 = vmatprep.subr.mxu0 0.0
      %1085 = vmatpush1.msra.mxu0 0.0
      %1086 = vmatprep.subr.mxu0 0.0
      %1087 = vmatpush1.msra.mxu0 0.0
      %1088 = vmatprep.subr.mxu0 0.0
      %1089 = vmatpush1.msra.mxu0 0.0
      %1090 = vmatprep.subr.mxu0 0.0
      %1091 = vmatpush1.msra.mxu0 0.0
      %1092 = vmatprep.subr.mxu0 0.0
      %1093 = vmatpush1.msra.mxu0 0.0
      %1094 = vmatprep.subr.mxu0 0.0
      %1095 = vmatpush1.msra.mxu0 0.0
      %1096 = vmatprep.subr.mxu0 0.0
      %1097 = vmatpush1.msra.mxu0 0.0
      %1098 = vmatprep.subr.mxu0 0.0
      %1099 = vmatpush1.msra.mxu0 0.0
      %1100 = vmatprep.subr.mxu0 0.0
      %1101 = vmatpush1.msra.mxu0 0.0
      %1102 = vmatprep.subr.mxu0 0.0
      %1103 = vmatpush1.msra.mxu0 0.0
      %1104 = vmatprep.subr.mxu0 0.0
      %1105 = vmatpush1.msra.mxu0 0.0
      %1106 = vmatprep.subr.mxu0 0.0
      %1107 = vmatpush1.msra.mxu0 0.0
      %1108 = vmatprep.subr.mxu0 0.0
      %1109 = vmatpush1.msra.mxu0 0.0
      %1110 = vmatprep.subr.mxu0 0.0
      %1111 = vmatpush1.msra.mxu0 0.0
      %1112 = vmatprep.subr.mxu0 0.0
      %1113 = vmatpush1.msra.mxu0 0.0
      %1114 = vmatprep.subr.mxu0 0.0
      %1115 = vmatpush1.msra.mxu0 0.0
      %1116 = vmatprep.subr.mxu0 0.0
      %1117 = vmatpush1.msra.mxu0 0.0
      %1118 = vmatprep.subr.mxu0 0.0
      %1119 = vmatpush1.msra.mxu0 0.0
      %1120 = vmatprep.subr.mxu0 0.0
      %1121 = vmatpush1.msra.mxu0 0.0
      %1122 = vmatprep.subr.mxu0 0.0
      %1123 = vmatpush1.msra.mxu0 0.0
      %1124 = vmatprep.subr.mxu0 0.0
      %1125 = vmatpush1.msra.mxu0 0.0
      %1126 = vmatprep.subr.mxu0 0.0
      %1127 = vmatpush1.msra.mxu0 0.0
      %1128 = vmatprep.subr.mxu0 0.0
      %1129 = vmatpush1.msra.mxu0 0.0
      %1130 = vmatprep.mubr.f32.mxu0 0.0
      %1131 = vmatmul.mubr.f32.gmra.mrb[0].mxu0 %v1040
      %v1132 = vpop.f32.mrb[0].mxu0
      %v1133 = vadd.f32 0.0, %v1132
      %v1134 = vpop.f32.mrb[0].mxu0
      %1135 = vmatprep.mubr.f32.mxu0 0.0
      %1136 = vmatmul.mubr.f32.gmra.mrb[0].mxu0 %v1043
      %v1137 = vpop.f32.mrb[0].mxu0
      %v1138 = vadd.f32 0.0, %v1137
      %v1139 = vpop.f32.mrb[0].mxu0
      %1140 = vmatprep.mubr.f32.mxu0 0.0
      %1141 = vmatmul.mubr.f32.gmra.mrb[0].mxu0 %v1046
      %v1142 = vpop.f32.mrb[0].mxu0
      %v1143 = vadd.f32 0.0, %v1142
      %v1144 = vpop.f32.mrb[0].mxu0
      %1145 = vmatprep.mubr.f32.mxu0 0.0
      %1146 = vmatmul.mubr.f32.gmra.mrb[0].mxu0 %v1049
      %v1147 = vpop.f32.mrb[0].mxu0
      %v1148 = vadd.f32 0.0, %v1147
      %v1149 = vpop.f32.mrb[0].mxu0
      %1150 = vmatprep.mubr.f32.mxu0 0.0
      %1151 = vmatmul.mubr.f32.gmra.mrb[0].mxu0 %v1052
      %v1152 = vpop.f32.mrb[0].mxu0
      %v1153 = vadd.f32 0.0, %v1152
      %v1154 = vpop.f32.mrb[0].mxu0
      %1155 = vmatprep.mubr.f32.mxu0 0.0
      %1156 = vmatmul.mubr.f32.gmra.mrb[0].mxu0 %v1055
      %v1157 = vpop.f32.mrb[0].mxu0
      %v1158 = vadd.f32 0.0, %v1157
      %v1159 = vpop.f32.mrb[0].mxu0
      %1160 = vmatprep.mubr.f32.mxu0 0.0
      %1161 = vmatmul.mubr.f32.gmra.mrb[0].mxu0 %v1058
      %v1162 = vpop.f32.mrb[0].mxu0
      %v1163 = vadd.f32 0.0, %v1162
      %v1164 = vpop.f32.mrb[0].mxu0
      %1165 = vmatprep.mubr.f32.mxu0 0.0
      %1166 = vmatmul.mubr.f32.gmra.mrb[0].mxu0 %v1061
      %v1167 = vpop.f32.mrb[0].mxu0
      %v1168 = vadd.f32 0.0, %v1167
      %v1169 = vpop.f32.mrb[0].mxu0
      %1170 = vdwg.mxu0
      %v1171 = vadd.f32 %v1031, %v1133
      %v1172 = vadd.f32 %v1032, %v1138
      %v1173 = vadd.f32 %v1033, %v1143
      %v1174 = vadd.f32 %v1034, %v1148
      %v1175 = vadd.f32 %v1035, %v1153
      %v1176 = vadd.f32 %v1036, %v1158
      %v1177 = vadd.f32 %v1037, %v1163
      %v1178 = vadd.f32 %v1038, %v1168
      %1179 = vst [vmem:[#allocation2] sm:$0xff] %v1171
      %1180 = vst [vmem:[#allocation2 + $0x8] sm:$0xff] %v1172
      %1181 = vst [vmem:[#allocation2 + $0x10] sm:$0xff] %v1173
      %1182 = vst [vmem:[#allocation2 + $0x18] sm:$0xff] %v1174
      %1183 = vst [vmem:[#allocation2 + $0x20] sm:$0xff] %v1175
      %1184 = vst [vmem:[#allocation2 + $0x28] sm:$0xff] %v1176
      %1185 = vst [vmem:[#allocation2 + $0x30] sm:$0xff] %v1177
      %1186 = vst [vmem:[#allocation2 + $0x38] sm:$0xff] %v1178
      %v1195 = vrot.slane %v347, 1
      %v1196 = vrot.slane %v348, 1
      %v1197 = vsel %vm696, %v1195, %v1196
      %v1198 = vrot.slane %v349, 1
      %v1199 = vrot.slane %v350, 1
      %v1200 = vsel %vm696, %v1198, %v1199
      %v1201 = vrot.slane %v351, 1
      %v1202 = vrot.slane %v352, 1
      %v1203 = vsel %vm696, %v1201, %v1202
      %v1204 = vrot.slane %v353, 1
      %v1205 = vrot.slane %v354, 1
      %v1206 = vsel %vm696, %v1204, %v1205
      %v1207 = vrot.slane %v355, 1
      %v1208 = vrot.slane %v356, 1
      %v1209 = vsel %vm696, %v1207, %v1208
      %v1210 = vrot.slane %v357, 1
      %v1211 = vrot.slane %v358, 1
      %v1212 = vsel %vm696, %v1210, %v1211
      %v1213 = vrot.slane %v359, 1
      %v1214 = vrot.slane %v360, 1
      %v1215 = vsel %vm696, %v1213, %v1214
      %v1216 = vrot.slane %v361, 1
      %v1217 = vrot.slane %v362, 1
      %v1218 = vsel %vm696, %v1216, %v1217
      %s1219 = scalar_lea.vmem %s4, 20
      %v1220 = vld [vmem:[%s1219] sm:$0xf]
      %v1221 = vld [vmem:[#allocation2] sm:$0xff]
      %v1222 = vld [vmem:[#allocation2 + $0x8] sm:$0xff]
      %v1223 = vld [vmem:[#allocation2 + $0x10] sm:$0xff]
      %v1224 = vld [vmem:[#allocation2 + $0x18] sm:$0xff]
      %v1225 = vld [vmem:[#allocation2 + $0x20] sm:$0xff]
      %v1226 = vld [vmem:[#allocation2 + $0x28] sm:$0xff]
      %v1227 = vld [vmem:[#allocation2 + $0x30] sm:$0xff]
      %v1228 = vld [vmem:[#allocation2 + $0x38] sm:$0xff]
      %v1229 = vsel %vm380, %v1197, 0
      %v1231 = vsel %vm380, %v1200, 0
      %v1233 = vsel %vm380, %v1203, 0
      %v1235 = vsel %vm380, %v1206, 0
      %v1237 = vsel %vm380, %v1209, 0
      %v1239 = vsel %vm380, %v1212, 0
      %v1241 = vsel %vm380, %v1215, 0
      %v1243 = vsel %vm380, %v1218, 0
      %v1246 = vsel %vm405, %v1220, 0
      %1248 = vmatprep.subr.mxu0 0.0
      %1249 = vmatpush1.msra.mxu0 %v1246
      %1250 = vmatprep.subr.mxu0 0.0
      %1251 = vmatpush1.msra.mxu0 0.0
      %1252 = vmatprep.subr.mxu0 0.0
      %1253 = vmatpush1.msra.mxu0 0.0
      %1254 = vmatprep.subr.mxu0 0.0
      %1255 = vmatpush1.msra.mxu0 0.0
      %1256 = vmatprep.subr.mxu0 0.0
      %1257 = vmatpush1.msra.mxu0 0.0
      %1258 = vmatprep.subr.mxu0 0.0
      %1259 = vmatpush1.msra.mxu0 0.0
      %1260 = vmatprep.subr.mxu0 0.0
      %1261 = vmatpush1.msra.mxu0 0.0
      %1262 = vmatprep.subr.mxu0 0.0
      %1263 = vmatpush1.msra.mxu0 0.0
      %1264 = vmatprep.subr.mxu0 0.0
      %1265 = vmatpush1.msra.mxu0 0.0
      %1266 = vmatprep.subr.mxu0 0.0
      %1267 = vmatpush1.msra.mxu0 0.0
      %1268 = vmatprep.subr.mxu0 0.0
      %1269 = vmatpush1.msra.mxu0 0.0
      %1270 = vmatprep.subr.mxu0 0.0
      %1271 = vmatpush1.msra.mxu0 0.0
      %1272 = vmatprep.subr.mxu0 0.0
      %1273 = vmatpush1.msra.mxu0 0.0
      %1274 = vmatprep.subr.mxu0 0.0
      %1275 = vmatpush1.msra.mxu0 0.0
      %1276 = vmatprep.subr.mxu0 0.0
      %1277 = vmatpush1.msra.mxu0 0.0
      %1278 = vmatprep.subr.mxu0 0.0
      %1279 = vmatpush1.msra.mxu0 0.0
      %1280 = vmatprep.subr.mxu0 0.0
      %1281 = vmatpush1.msra.mxu0 0.0
      %1282 = vmatprep.subr.mxu0 0.0
      %1283 = vmatpush1.msra.mxu0 0.0
      %1284 = vmatprep.subr.mxu0 0.0
      %1285 = vmatpush1.msra.mxu0 0.0
      %1286 = vmatprep.subr.mxu0 0.0
      %1287 = vmatpush1.msra.mxu0 0.0
      %1288 = vmatprep.subr.mxu0 0.0
      %1289 = vmatpush1.msra.mxu0 0.0
      %1290 = vmatprep.subr.mxu0 0.0
      %1291 = vmatpush1.msra.mxu0 0.0
      %1292 = vmatprep.subr.mxu0 0.0
      %1293 = vmatpush1.msra.mxu0 0.0
      %1294 = vmatprep.subr.mxu0 0.0
      %1295 = vmatpush1.msra.mxu0 0.0
      %1296 = vmatprep.subr.mxu0 0.0
      %1297 = vmatpush1.msra.mxu0 0.0
      %1298 = vmatprep.subr.mxu0 0.0
      %1299 = vmatpush1.msra.mxu0 0.0
      %1300 = vmatprep.subr.mxu0 0.0
      %1301 = vmatpush1.msra.mxu0 0.0
      %1302 = vmatprep.subr.mxu0 0.0
      %1303 = vmatpush1.msra.mxu0 0.0
      %1304 = vmatprep.subr.mxu0 0.0
      %1305 = vmatpush1.msra.mxu0 0.0
      %1306 = vmatprep.subr.mxu0 0.0
      %1307 = vmatpush1.msra.mxu0 0.0
      %1308 = vmatprep.subr.mxu0 0.0
      %1309 = vmatpush1.msra.mxu0 0.0
      %1310 = vmatprep.subr.mxu0 0.0
      %1311 = vmatpush1.msra.mxu0 0.0
      %1312 = vmatprep.mubr.f32.mxu0 0.0
      %1313 = vmatmul.mubr.f32.gmra.mrb[0].mxu0 %v1229
      %v1314 = vpop.f32.mrb[0].mxu0
      %v1315 = vadd.f32 0.0, %v1314
      %v1316 = vpop.f32.mrb[0].mxu0
      %1317 = vmatprep.mubr.f32.mxu0 0.0
      %1318 = vmatmul.mubr.f32.gmra.mrb[0].mxu0 %v1231
      %v1319 = vpop.f32.mrb[0].mxu0
      %v1320 = vadd.f32 0.0, %v1319
      %v1321 = vpop.f32.mrb[0].mxu0
      %1322 = vmatprep.mubr.f32.mxu0 0.0
      %1323 = vmatmul.mubr.f32.gmra.mrb[0].mxu0 %v1233
      %v1324 = vpop.f32.mrb[0].mxu0
      %v1325 = vadd.f32 0.0, %v1324
      %v1326 = vpop.f32.mrb[0].mxu0
      %1327 = vmatprep.mubr.f32.mxu0 0.0
      %1328 = vmatmul.mubr.f32.gmra.mrb[0].mxu0 %v1235
      %v1329 = vpop.f32.mrb[0].mxu0
      %v1330 = vadd.f32 0.0, %v1329
      %v1331 = vpop.f32.mrb[0].mxu0
      %1332 = vmatprep.mubr.f32.mxu0 0.0
      %1333 = vmatmul.mubr.f32.gmra.mrb[0].mxu0 %v1237
      %v1334 = vpop.f32.mrb[0].mxu0
      %v1335 = vadd.f32 0.0, %v1334
      %v1336 = vpop.f32.mrb[0].mxu0
      %1337 = vmatprep.mubr.f32.mxu0 0.0
      %1338 = vmatmul.mubr.f32.gmra.mrb[0].mxu0 %v1239
      %v1339 = vpop.f32.mrb[0].mxu0
      %v1340 = vadd.f32 0.0, %v1339
      %v1341 = vpop.f32.mrb[0].mxu0
      %1342 = vmatprep.mubr.f32.mxu0 0.0
      %1343 = vmatmul.mubr.f32.gmra.mrb[0].mxu0 %v1241
      %v1344 = vpop.f32.mrb[0].mxu0
      %v1345 = vadd.f32 0.0, %v1344
      %v1346 = vpop.f32.mrb[0].mxu0
      %1347 = vmatprep.mubr.f32.mxu0 0.0
      %1348 = vmatmul.mubr.f32.gmra.mrb[0].mxu0 %v1243
      %v1349 = vpop.f32.mrb[0].mxu0
      %v1350 = vadd.f32 0.0, %v1349
      %v1351 = vpop.f32.mrb[0].mxu0
      %1352 = vdwg.mxu0
      %v1353 = vadd.f32 %v1221, %v1315
      %v1354 = vadd.f32 %v1222, %v1320
      %v1355 = vadd.f32 %v1223, %v1325
      %v1356 = vadd.f32 %v1224, %v1330
      %v1357 = vadd.f32 %v1225, %v1335
      %v1358 = vadd.f32 %v1226, %v1340
      %v1359 = vadd.f32 %v1227, %v1345
      %v1360 = vadd.f32 %v1228, %v1350
      %1361 = vst [vmem:[#allocation2] sm:$0xff] %v1353
      %1362 = vst [vmem:[#allocation2 + $0x8] sm:$0xff] %v1354
      %1363 = vst [vmem:[#allocation2 + $0x10] sm:$0xff] %v1355
      %1364 = vst [vmem:[#allocation2 + $0x18] sm:$0xff] %v1356
      %1365 = vst [vmem:[#allocation2 + $0x20] sm:$0xff] %v1357
      %1366 = vst [vmem:[#allocation2 + $0x28] sm:$0xff] %v1358
      %1367 = vst [vmem:[#allocation2 + $0x30] sm:$0xff] %v1359
      %1368 = vst [vmem:[#allocation2 + $0x38] sm:$0xff] %v1360
      %s1369 = scalar_lea.vmem %s4, 24
      %v1370 = vld [vmem:[%s1369] sm:$0xf]
      %v1371 = vld [vmem:[#allocation2] sm:$0xff]
      %v1372 = vld [vmem:[#allocation2 + $0x8] sm:$0xff]
      %v1373 = vld [vmem:[#allocation2 + $0x10] sm:$0xff]
      %v1374 = vld [vmem:[#allocation2 + $0x18] sm:$0xff]
      %v1375 = vld [vmem:[#allocation2 + $0x20] sm:$0xff]
      %v1376 = vld [vmem:[#allocation2 + $0x28] sm:$0xff]
      %v1377 = vld [vmem:[#allocation2 + $0x30] sm:$0xff]
      %v1378 = vld [vmem:[#allocation2 + $0x38] sm:$0xff]
      %v1380 = vsel %vm380, %v336, 0
      %v1383 = vsel %vm405, %v1370, 0
      %1385 = vmatprep.subr.mxu0 0.0
      %1386 = vmatpush1.msra.mxu0 %v1383
      %1387 = vmatprep.subr.mxu0 0.0
      %1388 = vmatpush1.msra.mxu0 0.0
      %1389 = vmatprep.subr.mxu0 0.0
      %1390 = vmatpush1.msra.mxu0 0.0
      %1391 = vmatprep.subr.mxu0 0.0
      %1392 = vmatpush1.msra.mxu0 0.0
      %1393 = vmatprep.subr.mxu0 0.0
      %1394 = vmatpush1.msra.mxu0 0.0
      %1395 = vmatprep.subr.mxu0 0.0
      %1396 = vmatpush1.msra.mxu0 0.0
      %1397 = vmatprep.subr.mxu0 0.0
      %1398 = vmatpush1.msra.mxu0 0.0
      %1399 = vmatprep.subr.mxu0 0.0
      %1400 = vmatpush1.msra.mxu0 0.0
      %1401 = vmatprep.subr.mxu0 0.0
      %1402 = vmatpush1.msra.mxu0 0.0
      %1403 = vmatprep.subr.mxu0 0.0
      %1404 = vmatpush1.msra.mxu0 0.0
      %1405 = vmatprep.subr.mxu0 0.0
      %1406 = vmatpush1.msra.mxu0 0.0
      %1407 = vmatprep.subr.mxu0 0.0
      %1408 = vmatpush1.msra.mxu0 0.0
      %1409 = vmatprep.subr.mxu0 0.0
      %1410 = vmatpush1.msra.mxu0 0.0
      %1411 = vmatprep.subr.mxu0 0.0
      %1412 = vmatpush1.msra.mxu0 0.0
      %1413 = vmatprep.subr.mxu0 0.0
      %1414 = vmatpush1.msra.mxu0 0.0
      %1415 = vmatprep.subr.mxu0 0.0
      %1416 = vmatpush1.msra.mxu0 0.0
      %1417 = vmatprep.subr.mxu0 0.0
      %1418 = vmatpush1.msra.mxu0 0.0
      %1419 = vmatprep.subr.mxu0 0.0
      %1420 = vmatpush1.msra.mxu0 0.0
      %1421 = vmatprep.subr.mxu0 0.0
      %1422 = vmatpush1.msra.mxu0 0.0
      %1423 = vmatprep.subr.mxu0 0.0
      %1424 = vmatpush1.msra.mxu0 0.0
      %1425 = vmatprep.subr.mxu0 0.0
      %1426 = vmatpush1.msra.mxu0 0.0
      %1427 = vmatprep.subr.mxu0 0.0
      %1428 = vmatpush1.msra.mxu0 0.0
      %1429 = vmatprep.subr.mxu0 0.0
      %1430 = vmatpush1.msra.mxu0 0.0
      %1431 = vmatprep.subr.mxu0 0.0
      %1432 = vmatpush1.msra.mxu0 0.0
      %1433 = vmatprep.subr.mxu0 0.0
      %1434 = vmatpush1.msra.mxu0 0.0
      %1435 = vmatprep.subr.mxu0 0.0
      %1436 = vmatpush1.msra.mxu0 0.0
      %1437 = vmatprep.subr.mxu0 0.0
      %1438 = vmatpush1.msra.mxu0 0.0
      %1439 = vmatprep.subr.mxu0 0.0
      %1440 = vmatpush1.msra.mxu0 0.0
      %1441 = vmatprep.subr.mxu0 0.0
      %1442 = vmatpush1.msra.mxu0 0.0
      %1443 = vmatprep.subr.mxu0 0.0
      %1444 = vmatpush1.msra.mxu0 0.0
      %1445 = vmatprep.subr.mxu0 0.0
      %1446 = vmatpush1.msra.mxu0 0.0
      %1447 = vmatprep.subr.mxu0 0.0
      %1448 = vmatpush1.msra.mxu0 0.0
      %1449 = vmatprep.mubr.f32.mxu0 0.0
      %1450 = vmatmul.mubr.f32.gmra.mrb[0].mxu0 %v385
      %v1451 = vpop.f32.mrb[0].mxu0
      %v1452 = vadd.f32 0.0, %v1451
      %v1453 = vpop.f32.mrb[0].mxu0
      %1454 = vmatprep.mubr.f32.mxu0 0.0
      %1455 = vmatmul.mubr.f32.gmra.mrb[0].mxu0 %v388
      %v1456 = vpop.f32.mrb[0].mxu0
      %v1457 = vadd.f32 0.0, %v1456
      %v1458 = vpop.f32.mrb[0].mxu0
      %1459 = vmatprep.mubr.f32.mxu0 0.0
      %1460 = vmatmul.mubr.f32.gmra.mrb[0].mxu0 %v391
      %v1461 = vpop.f32.mrb[0].mxu0
      %v1462 = vadd.f32 0.0, %v1461
      %v1463 = vpop.f32.mrb[0].mxu0
      %1464 = vmatprep.mubr.f32.mxu0 0.0
      %1465 = vmatmul.mubr.f32.gmra.mrb[0].mxu0 %v394
      %v1466 = vpop.f32.mrb[0].mxu0
      %v1467 = vadd.f32 0.0, %v1466
      %v1468 = vpop.f32.mrb[0].mxu0
      %1469 = vmatprep.mubr.f32.mxu0 0.0
      %1470 = vmatmul.mubr.f32.gmra.mrb[0].mxu0 %v397
      %v1471 = vpop.f32.mrb[0].mxu0
      %v1472 = vadd.f32 0.0, %v1471
      %v1473 = vpop.f32.mrb[0].mxu0
      %1474 = vmatprep.mubr.f32.mxu0 0.0
      %1475 = vmatmul.mubr.f32.gmra.mrb[0].mxu0 %v400
      %v1476 = vpop.f32.mrb[0].mxu0
      %v1477 = vadd.f32 0.0, %v1476
      %v1478 = vpop.f32.mrb[0].mxu0
      %1479 = vmatprep.mubr.f32.mxu0 0.0
      %1480 = vmatmul.mubr.f32.gmra.mrb[0].mxu0 %v403
      %v1481 = vpop.f32.mrb[0].mxu0
      %v1482 = vadd.f32 0.0, %v1481
      %v1483 = vpop.f32.mrb[0].mxu0
      %1484 = vmatprep.mubr.f32.mxu0 0.0
      %1485 = vmatmul.mubr.f32.gmra.mrb[0].mxu0 %v1380
      %v1486 = vpop.f32.mrb[0].mxu0
      %v1487 = vadd.f32 0.0, %v1486
      %v1488 = vpop.f32.mrb[0].mxu0
      %1489 = vdwg.mxu0
      %v1490 = vadd.f32 %v1371, %v1452
      %v1491 = vadd.f32 %v1372, %v1457
      %v1492 = vadd.f32 %v1373, %v1462
      %v1493 = vadd.f32 %v1374, %v1467
      %v1494 = vadd.f32 %v1375, %v1472
      %v1495 = vadd.f32 %v1376, %v1477
      %v1496 = vadd.f32 %v1377, %v1482
      %v1497 = vadd.f32 %v1378, %v1487
      %1498 = vst [vmem:[#allocation2] sm:$0xff] %v1490
      %1499 = vst [vmem:[#allocation2 + $0x8] sm:$0xff] %v1491
      %1500 = vst [vmem:[#allocation2 + $0x10] sm:$0xff] %v1492
      %1501 = vst [vmem:[#allocation2 + $0x18] sm:$0xff] %v1493
      %1502 = vst [vmem:[#allocation2 + $0x20] sm:$0xff] %v1494
      %1503 = vst [vmem:[#allocation2 + $0x28] sm:$0xff] %v1495
      %1504 = vst [vmem:[#allocation2 + $0x30] sm:$0xff] %v1496
      %1505 = vst [vmem:[#allocation2 + $0x38] sm:$0xff] %v1497
      %s1506 = scalar_lea.vmem %s4, 28
      %v1507 = vld [vmem:[%s1506] sm:$0xf]
      %v1508 = vld [vmem:[#allocation2] sm:$0xff]
      %v1509 = vld [vmem:[#allocation2 + $0x8] sm:$0xff]
      %v1510 = vld [vmem:[#allocation2 + $0x10] sm:$0xff]
      %v1511 = vld [vmem:[#allocation2 + $0x18] sm:$0xff]
      %v1512 = vld [vmem:[#allocation2 + $0x20] sm:$0xff]
      %v1513 = vld [vmem:[#allocation2 + $0x28] sm:$0xff]
      %v1514 = vld [vmem:[#allocation2 + $0x30] sm:$0xff]
      %v1515 = vld [vmem:[#allocation2 + $0x38] sm:$0xff]
      %v1517 = vsel %vm380, %v346, 0
      %v1520 = vsel %vm405, %v1507, 0
      %1522 = vmatprep.subr.mxu0 0.0
      %1523 = vmatpush1.msra.mxu0 %v1520
      %1524 = vmatprep.subr.mxu0 0.0
      %1525 = vmatpush1.msra.mxu0 0.0
      %1526 = vmatprep.subr.mxu0 0.0
      %1527 = vmatpush1.msra.mxu0 0.0
      %1528 = vmatprep.subr.mxu0 0.0
      %1529 = vmatpush1.msra.mxu0 0.0
      %1530 = vmatprep.subr.mxu0 0.0
      %1531 = vmatpush1.msra.mxu0 0.0
      %1532 = vmatprep.subr.mxu0 0.0
      %1533 = vmatpush1.msra.mxu0 0.0
      %1534 = vmatprep.subr.mxu0 0.0
      %1535 = vmatpush1.msra.mxu0 0.0
      %1536 = vmatprep.subr.mxu0 0.0
      %1537 = vmatpush1.msra.mxu0 0.0
      %1538 = vmatprep.subr.mxu0 0.0
      %1539 = vmatpush1.msra.mxu0 0.0
      %1540 = vmatprep.subr.mxu0 0.0
      %1541 = vmatpush1.msra.mxu0 0.0
      %1542 = vmatprep.subr.mxu0 0.0
      %1543 = vmatpush1.msra.mxu0 0.0
      %1544 = vmatprep.subr.mxu0 0.0
      %1545 = vmatpush1.msra.mxu0 0.0
      %1546 = vmatprep.subr.mxu0 0.0
      %1547 = vmatpush1.msra.mxu0 0.0
      %1548 = vmatprep.subr.mxu0 0.0
      %1549 = vmatpush1.msra.mxu0 0.0
      %1550 = vmatprep.subr.mxu0 0.0
      %1551 = vmatpush1.msra.mxu0 0.0
      %1552 = vmatprep.subr.mxu0 0.0
      %1553 = vmatpush1.msra.mxu0 0.0
      %1554 = vmatprep.subr.mxu0 0.0
      %1555 = vmatpush1.msra.mxu0 0.0
      %1556 = vmatprep.subr.mxu0 0.0
      %1557 = vmatpush1.msra.mxu0 0.0
      %1558 = vmatprep.subr.mxu0 0.0
      %1559 = vmatpush1.msra.mxu0 0.0
      %1560 = vmatprep.subr.mxu0 0.0
      %1561 = vmatpush1.msra.mxu0 0.0
      %1562 = vmatprep.subr.mxu0 0.0
      %1563 = vmatpush1.msra.mxu0 0.0
      %1564 = vmatprep.subr.mxu0 0.0
      %1565 = vmatpush1.msra.mxu0 0.0
      %1566 = vmatprep.subr.mxu0 0.0
      %1567 = vmatpush1.msra.mxu0 0.0
      %1568 = vmatprep.subr.mxu0 0.0
      %1569 = vmatpush1.msra.mxu0 0.0
      %1570 = vmatprep.subr.mxu0 0.0
      %1571 = vmatpush1.msra.mxu0 0.0
      %1572 = vmatprep.subr.mxu0 0.0
      %1573 = vmatpush1.msra.mxu0 0.0
      %1574 = vmatprep.subr.mxu0 0.0
      %1575 = vmatpush1.msra.mxu0 0.0
      %1576 = vmatprep.subr.mxu0 0.0
      %1577 = vmatpush1.msra.mxu0 0.0
      %1578 = vmatprep.subr.mxu0 0.0
      %1579 = vmatpush1.msra.mxu0 0.0
      %1580 = vmatprep.subr.mxu0 0.0
      %1581 = vmatpush1.msra.mxu0 0.0
      %1582 = vmatprep.subr.mxu0 0.0
      %1583 = vmatpush1.msra.mxu0 0.0
      %1584 = vmatprep.subr.mxu0 0.0
      %1585 = vmatpush1.msra.mxu0 0.0
      %1586 = vmatprep.mubr.f32.mxu0 0.0
      %1587 = vmatmul.mubr.f32.gmra.mrb[0].mxu0 %v544
      %v1588 = vpop.f32.mrb[0].mxu0
      %v1589 = vadd.f32 0.0, %v1588
      %v1590 = vpop.f32.mrb[0].mxu0
      %1591 = vmatprep.mubr.f32.mxu0 0.0
      %1592 = vmatmul.mubr.f32.gmra.mrb[0].mxu0 %v547
      %v1593 = vpop.f32.mrb[0].mxu0
      %v1594 = vadd.f32 0.0, %v1593
      %v1595 = vpop.f32.mrb[0].mxu0
      %1596 = vmatprep.mubr.f32.mxu0 0.0
      %1597 = vmatmul.mubr.f32.gmra.mrb[0].mxu0 %v550
      %v1598 = vpop.f32.mrb[0].mxu0
      %v1599 = vadd.f32 0.0, %v1598
      %v1600 = vpop.f32.mrb[0].mxu0
      %1601 = vmatprep.mubr.f32.mxu0 0.0
      %1602 = vmatmul.mubr.f32.gmra.mrb[0].mxu0 %v553
      %v1603 = vpop.f32.mrb[0].mxu0
      %v1604 = vadd.f32 0.0, %v1603
      %v1605 = vpop.f32.mrb[0].mxu0
      %1606 = vmatprep.mubr.f32.mxu0 0.0
      %1607 = vmatmul.mubr.f32.gmra.mrb[0].mxu0 %v556
      %v1608 = vpop.f32.mrb[0].mxu0
      %v1609 = vadd.f32 0.0, %v1608
      %v1610 = vpop.f32.mrb[0].mxu0
      %1611 = vmatprep.mubr.f32.mxu0 0.0
      %1612 = vmatmul.mubr.f32.gmra.mrb[0].mxu0 %v559
      %v1613 = vpop.f32.mrb[0].mxu0
      %v1614 = vadd.f32 0.0, %v1613
      %v1615 = vpop.f32.mrb[0].mxu0
      %1616 = vmatprep.mubr.f32.mxu0 0.0
      %1617 = vmatmul.mubr.f32.gmra.mrb[0].mxu0 %v562
      %v1618 = vpop.f32.mrb[0].mxu0
      %v1619 = vadd.f32 0.0, %v1618
      %v1620 = vpop.f32.mrb[0].mxu0
      %1621 = vmatprep.mubr.f32.mxu0 0.0
      %1622 = vmatmul.mubr.f32.gmra.mrb[0].mxu0 %v1517
      %v1623 = vpop.f32.mrb[0].mxu0
      %v1624 = vadd.f32 0.0, %v1623
      %v1625 = vpop.f32.mrb[0].mxu0
      %1626 = vdwg.mxu0
      %v1627 = vadd.f32 %v1508, %v1589
      %v1628 = vadd.f32 %v1509, %v1594
      %v1629 = vadd.f32 %v1510, %v1599
      %v1630 = vadd.f32 %v1511, %v1604
      %v1631 = vadd.f32 %v1512, %v1609
      %v1632 = vadd.f32 %v1513, %v1614
      %v1633 = vadd.f32 %v1514, %v1619
      %v1634 = vadd.f32 %v1515, %v1624
      %1635 = vst [vmem:[#allocation2] sm:$0xff] %v1627
      %1636 = vst [vmem:[#allocation2 + $0x8] sm:$0xff] %v1628
      %1637 = vst [vmem:[#allocation2 + $0x10] sm:$0xff] %v1629
      %1638 = vst [vmem:[#allocation2 + $0x18] sm:$0xff] %v1630
      %1639 = vst [vmem:[#allocation2 + $0x20] sm:$0xff] %v1631
      %1640 = vst [vmem:[#allocation2 + $0x28] sm:$0xff] %v1632
      %1641 = vst [vmem:[#allocation2 + $0x30] sm:$0xff] %v1633
      %1642 = vst [vmem:[#allocation2 + $0x38] sm:$0xff] %v1634
      %v1644 = vrot.slane %v336, 1
      %v1645 = vrot.slane %v337, 1
      %v1646 = vsel %vm696, %v1644, %v1645
      %s1647 = scalar_lea.vmem %s4, 32
      %v1648 = vld [vmem:[%s1647] sm:$0xf]
      %v1649 = vld [vmem:[#allocation2] sm:$0xff]
      %v1650 = vld [vmem:[#allocation2 + $0x8] sm:$0xff]
      %v1651 = vld [vmem:[#allocation2 + $0x10] sm:$0xff]
      %v1652 = vld [vmem:[#allocation2 + $0x18] sm:$0xff]
      %v1653 = vld [vmem:[#allocation2 + $0x20] sm:$0xff]
      %v1654 = vld [vmem:[#allocation2 + $0x28] sm:$0xff]
      %v1655 = vld [vmem:[#allocation2 + $0x30] sm:$0xff]
      %v1656 = vld [vmem:[#allocation2 + $0x38] sm:$0xff]
      %v1657 = vsel %vm380, %v1646, 0
      %v1660 = vsel %vm405, %v1648, 0
      %1662 = vmatprep.subr.mxu0 0.0
      %1663 = vmatpush1.msra.mxu0 %v1660
      %1664 = vmatprep.subr.mxu0 0.0
      %1665 = vmatpush1.msra.mxu0 0.0
      %1666 = vmatprep.subr.mxu0 0.0
      %1667 = vmatpush1.msra.mxu0 0.0
      %1668 = vmatprep.subr.mxu0 0.0
      %1669 = vmatpush1.msra.mxu0 0.0
      %1670 = vmatprep.subr.mxu0 0.0
      %1671 = vmatpush1.msra.mxu0 0.0
      %1672 = vmatprep.subr.mxu0 0.0
      %1673 = vmatpush1.msra.mxu0 0.0
      %1674 = vmatprep.subr.mxu0 0.0
      %1675 = vmatpush1.msra.mxu0 0.0
      %1676 = vmatprep.subr.mxu0 0.0
      %1677 = vmatpush1.msra.mxu0 0.0
      %1678 = vmatprep.subr.mxu0 0.0
      %1679 = vmatpush1.msra.mxu0 0.0
      %1680 = vmatprep.subr.mxu0 0.0
      %1681 = vmatpush1.msra.mxu0 0.0
      %1682 = vmatprep.subr.mxu0 0.0
      %1683 = vmatpush1.msra.mxu0 0.0
      %1684 = vmatprep.subr.mxu0 0.0
      %1685 = vmatpush1.msra.mxu0 0.0
      %1686 = vmatprep.subr.mxu0 0.0
      %1687 = vmatpush1.msra.mxu0 0.0
      %1688 = vmatprep.subr.mxu0 0.0
      %1689 = vmatpush1.msra.mxu0 0.0
      %1690 = vmatprep.subr.mxu0 0.0
      %1691 = vmatpush1.msra.mxu0 0.0
      %1692 = vmatprep.subr.mxu0 0.0
      %1693 = vmatpush1.msra.mxu0 0.0
      %1694 = vmatprep.subr.mxu0 0.0
      %1695 = vmatpush1.msra.mxu0 0.0
      %1696 = vmatprep.subr.mxu0 0.0
      %1697 = vmatpush1.msra.mxu0 0.0
      %1698 = vmatprep.subr.mxu0 0.0
      %1699 = vmatpush1.msra.mxu0 0.0
      %1700 = vmatprep.subr.mxu0 0.0
      %1701 = vmatpush1.msra.mxu0 0.0
      %1702 = vmatprep.subr.mxu0 0.0
      %1703 = vmatpush1.msra.mxu0 0.0
      %1704 = vmatprep.subr.mxu0 0.0
      %1705 = vmatpush1.msra.mxu0 0.0
      %1706 = vmatprep.subr.mxu0 0.0
      %1707 = vmatpush1.msra.mxu0 0.0
      %1708 = vmatprep.subr.mxu0 0.0
      %1709 = vmatpush1.msra.mxu0 0.0
      %1710 = vmatprep.subr.mxu0 0.0
      %1711 = vmatpush1.msra.mxu0 0.0
      %1712 = vmatprep.subr.mxu0 0.0
      %1713 = vmatpush1.msra.mxu0 0.0
      %1714 = vmatprep.subr.mxu0 0.0
      %1715 = vmatpush1.msra.mxu0 0.0
      %1716 = vmatprep.subr.mxu0 0.0
      %1717 = vmatpush1.msra.mxu0 0.0
      %1718 = vmatprep.subr.mxu0 0.0
      %1719 = vmatpush1.msra.mxu0 0.0
      %1720 = vmatprep.subr.mxu0 0.0
      %1721 = vmatpush1.msra.mxu0 0.0
      %1722 = vmatprep.subr.mxu0 0.0
      %1723 = vmatpush1.msra.mxu0 0.0
      %1724 = vmatprep.subr.mxu0 0.0
      %1725 = vmatpush1.msra.mxu0 0.0
      %1726 = vmatprep.mubr.f32.mxu0 0.0
      %1727 = vmatmul.mubr.f32.gmra.mrb[0].mxu0 %v733
      %v1728 = vpop.f32.mrb[0].mxu0
      %v1729 = vadd.f32 0.0, %v1728
      %v1730 = vpop.f32.mrb[0].mxu0
      %1731 = vmatprep.mubr.f32.mxu0 0.0
      %1732 = vmatmul.mubr.f32.gmra.mrb[0].mxu0 %v735
      %v1733 = vpop.f32.mrb[0].mxu0
      %v1734 = vadd.f32 0.0, %v1733
      %v1735 = vpop.f32.mrb[0].mxu0
      %1736 = vmatprep.mubr.f32.mxu0 0.0
      %1737 = vmatmul.mubr.f32.gmra.mrb[0].mxu0 %v737
      %v1738 = vpop.f32.mrb[0].mxu0
      %v1739 = vadd.f32 0.0, %v1738
      %v1740 = vpop.f32.mrb[0].mxu0
      %1741 = vmatprep.mubr.f32.mxu0 0.0
      %1742 = vmatmul.mubr.f32.gmra.mrb[0].mxu0 %v739
      %v1743 = vpop.f32.mrb[0].mxu0
      %v1744 = vadd.f32 0.0, %v1743
      %v1745 = vpop.f32.mrb[0].mxu0
      %1746 = vmatprep.mubr.f32.mxu0 0.0
      %1747 = vmatmul.mubr.f32.gmra.mrb[0].mxu0 %v741
      %v1748 = vpop.f32.mrb[0].mxu0
      %v1749 = vadd.f32 0.0, %v1748
      %v1750 = vpop.f32.mrb[0].mxu0
      %1751 = vmatprep.mubr.f32.mxu0 0.0
      %1752 = vmatmul.mubr.f32.gmra.mrb[0].mxu0 %v743
      %v1753 = vpop.f32.mrb[0].mxu0
      %v1754 = vadd.f32 0.0, %v1753
      %v1755 = vpop.f32.mrb[0].mxu0
      %1756 = vmatprep.mubr.f32.mxu0 0.0
      %1757 = vmatmul.mubr.f32.gmra.mrb[0].mxu0 %v745
      %v1758 = vpop.f32.mrb[0].mxu0
      %v1759 = vadd.f32 0.0, %v1758
      %v1760 = vpop.f32.mrb[0].mxu0
      %1761 = vmatprep.mubr.f32.mxu0 0.0
      %1762 = vmatmul.mubr.f32.gmra.mrb[0].mxu0 %v1657
      %v1763 = vpop.f32.mrb[0].mxu0
      %v1764 = vadd.f32 0.0, %v1763
      %v1765 = vpop.f32.mrb[0].mxu0
      %1766 = vdwg.mxu0
      %v1767 = vadd.f32 %v1649, %v1729
      %v1768 = vadd.f32 %v1650, %v1734
      %v1769 = vadd.f32 %v1651, %v1739
      %v1770 = vadd.f32 %v1652, %v1744
      %v1771 = vadd.f32 %v1653, %v1749
      %v1772 = vadd.f32 %v1654, %v1754
      %v1773 = vadd.f32 %v1655, %v1759
      %v1774 = vadd.f32 %v1656, %v1764
      %1775 = vst [vmem:[#allocation2] sm:$0xff] %v1767
      %1776 = vst [vmem:[#allocation2 + $0x8] sm:$0xff] %v1768
      %1777 = vst [vmem:[#allocation2 + $0x10] sm:$0xff] %v1769
      %1778 = vst [vmem:[#allocation2 + $0x18] sm:$0xff] %v1770
      %1779 = vst [vmem:[#allocation2 + $0x20] sm:$0xff] %v1771
      %1780 = vst [vmem:[#allocation2 + $0x28] sm:$0xff] %v1772
      %1781 = vst [vmem:[#allocation2 + $0x30] sm:$0xff] %v1773
      %1782 = vst [vmem:[#allocation2 + $0x38] sm:$0xff] %v1774
      %v1783 = vld [vmem:[#allocation2] sm:$0xff]
      %v1784 = vld [vmem:[#allocation2 + $0x8] sm:$0xff]
      %v1785 = vld [vmem:[#allocation2 + $0x10] sm:$0xff]
      %v1786 = vld [vmem:[#allocation2 + $0x18] sm:$0xff]
      %v1787 = vld [vmem:[#allocation2 + $0x20] sm:$0xff]
      %v1788 = vld [vmem:[#allocation2 + $0x28] sm:$0xff]
      %v1789 = vld [vmem:[#allocation2 + $0x30] sm:$0xff]
      %v1790 = vld [vmem:[#allocation2 + $0x38] sm:$0xff]
      %v1791 = vld [vmem:[%s5] sm:$0x1]
      %v1793 = vlaneseq
      %v1794 = vshrl.u32 %v1793, 7
      %v1795 = vsub.s32 0, %v1794
      %v1796 = vrot.slane %v1791, %v1795
      %v1798 = vadd.f32 %v1783, %v1796
      %v1799 = vadd.f32 %v1784, %v1796
      %v1800 = vadd.f32 %v1785, %v1796
      %v1801 = vadd.f32 %v1786, %v1796
      %v1802 = vadd.f32 %v1787, %v1796
      %v1803 = vadd.f32 %v1788, %v1796
      %v1804 = vadd.f32 %v1789, %v1796
      %v1805 = vadd.f32 %v1790, %v1796
      %v1806 = vmax.f32 %v1798, 0.0
      %v1807 = vmax.f32 %v1799, 0.0
      %v1808 = vmax.f32 %v1800, 0.0
      %v1809 = vmax.f32 %v1801, 0.0
      %v1810 = vmax.f32 %v1802, 0.0
      %v1811 = vmax.f32 %v1803, 0.0
      %v1812 = vmax.f32 %v1804, 0.0
      %v1813 = vmax.f32 %v1805, 0.0
      %1814 = vst [vmem:[%s311] sm:$0xff] %v1806
      %1815 = vst [vmem:[%s311 + $0x8] sm:$0xff] %v1807
      %1816 = vst [vmem:[%s311 + $0x10] sm:$0xff] %v1808
      %1817 = vst [vmem:[%s311 + $0x18] sm:$0xff] %v1809
      %1818 = vst [vmem:[%s311 + $0x20] sm:$0xff] %v1810
      %1819 = vst [vmem:[%s311 + $0x28] sm:$0xff] %v1811
      %1820 = vst [vmem:[%s311 + $0x30] sm:$0xff] %v1812
      %1821 = vst [vmem:[%s311 + $0x38] sm:$0xff] %v1813
      %p1822 = scmp.lt.s32.totalorder %s17, 1
      %s1823 = scalar_select %p1822, %s17, 1
      %s1824 = smul.addr %s1823, 8
      %s1825 = smul.addr %s1824, 8
      %s1826 = scalar_lea.vmem %s6, %s1825
      // Predicated region
      $region45: #{vitdown_forward.1} parent=43 // pred_check
        %p1827 = pneg %p181
      $region46: #{vitdown_forward.1} parent=43 // pred_check_branch
        %1829 = sbr.rel (%p1827) target = $region48
      $region47: #{vitdown_forward.1} parent=43 // pred_region
        _
      $region48: #{vitdown_forward.1} parent=43 // pred_fallthru
        _
    $region44: #{vitdown_forward.1} parent=5 // pred_fallthru
      _
    %p1830 = scmp.le.s32.totalorder 2, %s12
    // Predicated region
    $region49: #{vitdown_forward.1} parent=5 // pred_check
      %p1831 = pneg %p1830
    $region50: #{vitdown_forward.1} parent=5 // pred_check_branch
      %1833 = sbr.rel (%p1831) target = $region52
    $region51: #{vitdown_forward.1} parent=5 // pred_region
      %s1834 = ssub.s32 %s12, 2
      // Predicated region
      $region53: #{vitdown_forward.1} parent=51 // pred_check
        %p1835 = pneg %p187
      $region54: #{vitdown_forward.1} parent=51 // pred_check_branch
        %1837 = sbr.rel (%p1835) target = $region56
      $region55: #{vitdown_forward.1} parent=51 // pred_region
        %p1838 = scmp.lt.s32.totalorder %s18, 1
        %s1839 = scalar_select %p1838, %s18, 1
        %s1840 = smul.addr %s1839, 8
        %s1841 = smul.addr %s1840, 8
        %s1842 = scalar_lea.vmem %s6, %s1841
      $region56: #{vitdown_forward.1} parent=51 // pred_fallthru
        _
    $region52: #{vitdown_forward.1} parent=5 // pred_fallthru
      _
  $region6: #{vitdown_forward.1} parent=0 // loop_footer
    %s16 = sadd.s32 1, %s12
  $region7: #{vitdown_forward.1} parent=0 // loop_footer_branch
    %11 = sbr.rel target = $region3
  $region8: #{vitdown_forward.1} parent=0 // loop_exit
    _

</llo_original>
